<compile_context>
chip_gen: v7x
topology: tpu7x:2x2x1
jax: 0.10.0
libtpu: 0.0.40
codegen_flags: <defaults>
</compile_context>

<pallas_src>
import functools

import numpy as np
import jax
import jax.numpy as jnp
from jax import lax
from jax.experimental import pallas as pl
from jax.experimental.pallas import tpu as pltpu


# ---------------------------------------------------------------------------
# Pallas kernel: entire forward pass in one invocation; everything fits in VMEM.
# ---------------------------------------------------------------------------
def _lstm_model_kernel(
    x_ref,      # (S*B, I)    time-major flattened input
    w1_ref,     # (I, H)      linear_1 weight (pre-transposed)
    b1_ref,     # (1, H)
    wx_ref,     # (H, 8H)     fused input->gates weight for both layers (layer1 half zero)
    bx_ref,     # (1, 8H)     fused gate biases [layer0 | layer1], g-cols pre-scaled x2
    wbig_ref,   # (2H, 8H)    fused recurrent/cross-layer weights, g-cols pre-scaled x2
    w2_ref,     # (1, 2H)     last row of linear_2 weight
    b2_ref,     # (1,)  SMEM  last element of linear_2 bias
    out_ref,    # (B, 1)
    gx_buf,     # scratch (S, B, 8H): hoisted per-step input gates (lane-dense per step)
    *,
    seq_len,
    batch,
    hidden,
    input_size,
):
    S, B, H = seq_len, batch, hidden
    G2 = 2 * H  # per-gate super-block width (layer0 | layer1)

    # ----- linear_1 + ReLU: K=1 -> VPU broadcast multiply (no degenerate MXU matmul) -----
    x = x_ref[...]                                            # (S*B, I)
    if input_size == 1:
        h_lin = x * w1_ref[0:1, :] + b1_ref[0:1, :]           # (S*B, 1)*(1, H) broadcast
    else:
        h_lin = (
            jnp.dot(x, w1_ref[...], preferred_element_type=jnp.float32)
            + b1_ref[0:1, :]
        )
    h_lin = jnp.maximum(h_lin, 0.0)                           # (S*B, H)

    # ----- hoisted input->gates projections for BOTH layers, biases folded, one matmul -----
    # gate layout along last axis: [i0 i1 | f0 f1 | g0 g1 | o0 o1]
    gx = jnp.dot(h_lin, wx_ref[...], preferred_element_type=jnp.float32) + bx_ref[0:1, :]
    gx_buf[...] = gx.reshape(S, B, 8 * H)

    wbig = wbig_ref[...]                                      # (2H, 8H), loaded once

    def cell(gates, cc):
        # gates: (B, 8H) pre-activations; cc: (B, 2H) = [c_layer0 | c_layer1]
        sig = jax.nn.sigmoid(gates)                           # ONE full-width EUP pass
        i = sig[:, 0 * G2:1 * G2]
        f = sig[:, 1 * G2:2 * G2]
        g = 2.0 * sig[:, 2 * G2:3 * G2] - 1.0                 # tanh via pre-scaled sigmoid
        o = sig[:, 3 * G2:4 * G2]
        cc_new = f * cc + i * g
        hh_new = o * jnp.tanh(cc_new)                         # one (B, 2H) EUP pass
        return hh_new, cc_new

    # ----- prologue: layer-0 cell at t = 0 (zero initial state); layer-1 stays at zero -----
    sig0 = jax.nn.sigmoid(gx_buf[0])                          # (B, 8H)
    c0 = sig0[:, 0:H] * (2.0 * sig0[:, 4 * H:5 * H] - 1.0)    # i0 * g0   (c_prev = 0)
    h0 = sig0[:, 6 * H:7 * H] * jnp.tanh(c0)                  # o0 * tanh(c0)
    zeros_bh = jnp.zeros((B, H), jnp.float32)
    hh = jnp.concatenate([h0, zeros_bh], axis=1)              # [h0_t | h1_{t-1}]
    cc = jnp.concatenate([c0, zeros_bh], axis=1)

    # ----- fused two-layer wavefront: iteration t = layer-0 step t + layer-1 step t-1 -----
    def wave_step(t, carry):
        hh, cc = carry
        gates = jnp.dot(hh, wbig, preferred_element_type=jnp.float32) + gx_buf[t]
        return cell(gates, cc)

    hh, cc = lax.fori_loop(1, S, wave_step, (hh, cc), unroll=True)

    # ----- epilogue: layer-1 cell at t = S-1 (layer-0 half of the result is discarded) -----
    gates = jnp.dot(hh, wbig, preferred_element_type=jnp.float32) + gx_buf[S - 1]
    hh_e, _ = cell(gates, cc)
    h1_fin = hh_e[:, H:]                                      # final layer-1 hidden state

    # ----- head: predictions[:, -1] = sum(hcat * w2_last) + b2_last  (VPU mul + lane reduce) -----
    hcat = jnp.concatenate([hh[:, :H], h1_fin], axis=1)       # [h0_final | h1_final], (B, 2H)
    out_ref[...] = (
        jnp.sum(hcat * w2_ref[0:1, :], axis=1, keepdims=True) + b2_ref[0]
    )


# ---------------------------------------------------------------------------
# Wrapper: weight packing / gate reordering / g-gate pre-scaling, then one pallas_call.
# ---------------------------------------------------------------------------
def lstm_model_forward(x, params):
    """x: (B, S, input_size) float32.  Returns predictions[:, -1] of shape (B,)."""
    B, S, I = x.shape
    H = params["w1"].shape[0]
    G = 4 * H

    # glue: flatten time-major
    x_tm = jnp.transpose(x, (1, 0, 2)).reshape(S * B, I).astype(jnp.float32)
    w1t = params["w1"].T.astype(jnp.float32)                       # (I, H)
    b1 = params["b1"].reshape(1, H).astype(jnp.float32)

    wih0_t = params["w_ih0"].T.astype(jnp.float32)                 # (H, 4H)
    whh0_t = params["w_hh0"].T.astype(jnp.float32)
    bias0 = (params["b_ih0"] + params["b_hh0"]).reshape(1, G).astype(jnp.float32)
    wih1_t = params["w_ih1"].T.astype(jnp.float32)
    whh1_t = params["w_hh1"].T.astype(jnp.float32)
    bias1 = (params["b_ih1"] + params["b_hh1"]).reshape(1, G).astype(jnp.float32)

    zeros_hg = jnp.zeros((H, G), jnp.float32)
    # original 8H column layout: [i0 f0 g0 o0 | i1 f1 g1 o1]
    wx_orig = jnp.concatenate([wih0_t, zeros_hg], axis=1)          # (H, 8H)
    wbig_orig = jnp.concatenate(
        [
            jnp.concatenate([whh0_t, wih1_t], axis=1),             # rows multiplied by h0
            jnp.concatenate([zeros_hg, whh1_t], axis=1),           # rows multiplied by h1
        ],
        axis=0,
    )                                                              # (2H, 8H)
    bx_orig = jnp.concatenate([bias0, bias1], axis=1)              # (1, 8H)

    # column permutation -> per-gate super-blocks: [i0 i1 | f0 f1 | g0 g1 | o0 o1]
    perm = np.concatenate(
        [
            np.concatenate(
                [np.arange(g * H, (g + 1) * H), np.arange(G + g * H, G + (g + 1) * H)]
            )
            for g in range(4)
        ]
    )
    wx = wx_orig[:, perm]
    wbig = wbig_orig[:, perm]
    bx = bx_orig[:, perm]
    # pre-scale g-gate columns by 2 so the kernel recovers tanh(x) as 2*sigmoid(2x) - 1
    wx = wx.at[:, 4 * H:6 * H].multiply(2.0)
    wbig = wbig.at[:, 4 * H:6 * H].multiply(2.0)
    bx = bx.at[:, 4 * H:6 * H].multiply(2.0)

    # only the last output column of linear_2 is needed (module returns predictions[:, -1])
    w2_row = params["w2"][-1:].astype(jnp.float32)                 # (1, 2H)
    b2 = params["b2"][-1:].astype(jnp.float32)                     # (1,)  -> SMEM scalar

    vmem = pl.BlockSpec(memory_space=pltpu.MemorySpace.VMEM)
    smem = pl.BlockSpec(memory_space=pltpu.MemorySpace.SMEM)
    kernel = functools.partial(
        _lstm_model_kernel, seq_len=S, batch=B, hidden=H, input_size=I
    )

    out = pl.pallas_call(
        kernel,
        out_shape=jax.ShapeDtypeStruct((B, 1), jnp.float32),
        in_specs=[vmem, vmem, vmem, vmem, vmem, vmem, vmem, smem],
        out_specs=vmem,
        scratch_shapes=[
            pltpu.VMEM((S, B, 8 * H), jnp.float32),  # hoisted input gates (lane-dense/step)
        ],
    )(x_tm, w1t, b1, wx, bx, wbig, w2_row, b2)

    return out[:, 0]   # predictions[:, -1]


# ---------------------------------------------------------------------------
# Deterministic parameter construction (matches the module's init scheme)
# ---------------------------------------------------------------------------
def make_params(key, input_size=1, hidden=32, num_layers=2, output_size=1):
    keys = jax.random.split(key, 8)
    H = hidden

    def kaiming(k, shape):  # kaiming_normal_ on weight_ih
        fan_in = shape[1]
        return jax.random.normal(k, shape, jnp.float32) * jnp.sqrt(2.0 / fan_in)

    def orthogonal(k, shape):  # orthogonal_ on weight_hh
        a = jax.random.normal(k, shape, jnp.float32)
        q, _ = jnp.linalg.qr(a)
        return q[: shape[0], : shape[1]]

    params = {
        "w1": jax.random.normal(keys[0], (H, input_size), jnp.float32)
        * (1.0 / jnp.sqrt(input_size)),
        "b1": jax.random.normal(keys[1], (H,), jnp.float32) * 0.01,
        # LSTM layer 0 (input size H)
        "w_ih0": kaiming(keys[2], (4 * H, H)),
        "w_hh0": orthogonal(keys[3], (4 * H, H)),
        "b_ih0": jnp.zeros((4 * H,), jnp.float32),
        "b_hh0": jnp.zeros((4 * H,), jnp.float32),
        # LSTM layer 1 (input size H)
        "w_ih1": kaiming(keys[4], (4 * H, H)),
        "w_hh1": orthogonal(keys[5], (4 * H, H)),
        "b_ih1": jnp.zeros((4 * H,), jnp.float32),
        "b_hh1": jnp.zeros((4 * H,), jnp.float32),
        "w2": jax.random.normal(keys[6], (output_size, num_layers * H), jnp.float32)
        * (1.0 / jnp.sqrt(num_layers * H)),
        "b2": jax.random.normal(keys[7], (output_size,), jnp.float32) * 0.01,
    }
    return params


# ---------------------------------------------------------------------------
# Pure-JAX reference (same math as the PyTorch module) for a correctness check
# ---------------------------------------------------------------------------
def reference_forward(x, params):
    B, S, I = x.shape
    H = params["w1"].shape[0]
    h = jnp.maximum(jnp.einsum("bsi,hi->bsh", x, params["w1"]) + params["b1"], 0.0)

    def run_layer(seq, wih, whh, b):
        def cell(carry, x_t):
            h_prev, c_prev = carry
            gates = x_t @ wih.T + h_prev @ whh.T + b
            i = jax.nn.sigmoid(gates[:, 0 * H:1 * H])
            f = jax.nn.sigmoid(gates[:, 1 * H:2 * H])
            g = jnp.tanh(gates[:, 2 * H:3 * H])
            o = jax.nn.sigmoid(gates[:, 3 * H:4 * H])
            c = f * c_prev + i * g
            h_new = o * jnp.tanh(c)
            return (h_new, c), h_new

        init = (jnp.zeros((B, H), jnp.float32), jnp.zeros((B, H), jnp.float32))
        (h_fin, _), outs = lax.scan(cell, init, jnp.transpose(seq, (1, 0, 2)))
        return jnp.transpose(outs, (1, 0, 2)), h_fin

    seq0, h_n0 = run_layer(h, params["w_ih0"], params["w_hh0"],
                           params["b_ih0"] + params["b_hh0"])
    _, h_n1 = run_layer(seq0, params["w_ih1"], params["w_hh1"],
                        params["b_ih1"] + params["b_hh1"])
    hcat = jnp.concatenate([h_n0, h_n1], axis=-1)          # (B, 2H)
    preds = hcat @ params["w2"].T + params["b2"]           # (B, 1)
    return preds[:, -1]


if __name__ == "__main__":
    key = jax.random.PRNGKey(0)
    k_x, k_p = jax.random.split(key)

    B, S, I, H = 2, 8, 1, 32
    x = jax.random.normal(k_x, (B, S, I), jnp.float32)
    params = make_params(k_p, input_size=I, hidden=H, num_layers=2, output_size=1)

    out = jax.block_until_ready(lstm_model_forward(x, params))
    ref = jax.block_until_ready(reference_forward(x, params))

    assert out.shape == (B,)
    assert jnp.allclose(out, ref, rtol=1e-3, atol=1e-3), (out, ref)

    print("KERNEL_OK")
</pallas_src>

<mosaic_0001>
module attributes {stable_mosaic.version = 11 : i64} {
  func.func @_lstm_model_kernel(%arg0: memref<16x1xf32, #tpu.memory_space<vmem>>, %arg1: memref<1x32xf32, #tpu.memory_space<vmem>>, %arg2: memref<1x32xf32, #tpu.memory_space<vmem>>, %arg3: memref<32x256xf32, #tpu.memory_space<vmem>>, %arg4: memref<1x256xf32, #tpu.memory_space<vmem>>, %arg5: memref<64x256xf32, #tpu.memory_space<vmem>>, %arg6: memref<1x64xf32, #tpu.memory_space<vmem>>, %arg7: memref<1xf32, #tpu.memory_space<smem>>, %arg8: memref<2x1xf32, #tpu.memory_space<vmem>>, %arg9: memref<8x2x256xf32, #tpu.memory_space<vmem>>) attributes {dimension_semantics = [], scalar_prefetch = 0 : i64, scratch_operands = 1 : i64, tpu.core_type = #tpu.core_type<tc>} {
    %c0 = arith.constant 0 : index
    %c0_0 = arith.constant 0 : index
    %0 = vector.load %arg0[%c0, %c0_0] : memref<16x1xf32, #tpu.memory_space<vmem>>, vector<16x1xf32>
    %c0_1 = arith.constant 0 : index
    %c0_2 = arith.constant 0 : index
    %1 = vector.load %arg1[%c0_1, %c0_2] : memref<1x32xf32, #tpu.memory_space<vmem>>, vector<1x32xf32>
    %2 = vector.broadcast %0 : vector<16x1xf32> to vector<16x32xf32>
    %3 = vector.broadcast %1 : vector<1x32xf32> to vector<16x32xf32>
    %4 = arith.mulf %2, %3 : vector<16x32xf32>
    %c0_3 = arith.constant 0 : index
    %c0_4 = arith.constant 0 : index
    %5 = vector.load %arg2[%c0_3, %c0_4] : memref<1x32xf32, #tpu.memory_space<vmem>>, vector<1x32xf32>
    %6 = vector.broadcast %5 : vector<1x32xf32> to vector<16x32xf32>
    %7 = arith.addf %4, %6 : vector<16x32xf32>
    %cst = arith.constant 0.000000e+00 : f32
    %8 = vector.broadcast %cst : f32 to vector<16x32xf32>
    %9 = arith.maximumf %7, %8 : vector<16x32xf32>
    %c0_5 = arith.constant 0 : index
    %c0_6 = arith.constant 0 : index
    %10 = vector.load %arg3[%c0_5, %c0_6] : memref<32x256xf32, #tpu.memory_space<vmem>>, vector<32x256xf32>
    %cst_7 = arith.constant dense<0.000000e+00> : vector<16x256xf32>
    %11 = tpu.matmul %9, %10, %cst_7 {dimension_numbers = #tpu.dot_dimension_numbers<[1], [0], [0], [1], [0, 0, 1, 1], [], []>} : vector<16x32xf32>, vector<32x256xf32>, vector<16x256xf32> -> vector<16x256xf32>
    %c0_8 = arith.constant 0 : index
    %c0_9 = arith.constant 0 : index
    %12 = vector.load %arg4[%c0_8, %c0_9] : memref<1x256xf32, #tpu.memory_space<vmem>>, vector<1x256xf32>
    %13 = vector.broadcast %12 : vector<1x256xf32> to vector<16x256xf32>
    %14 = arith.addf %11, %13 : vector<16x256xf32>
    %15 = vector.shape_cast %14 : vector<16x256xf32> to vector<8x2x256xf32>
    %c0_10 = arith.constant 0 : index
    %c0_11 = arith.constant 0 : index
    %c0_12 = arith.constant 0 : index
    %16 = vector.load %arg9[%c0_10, %c0_11, %c0_12] : memref<8x2x256xf32, #tpu.memory_space<vmem>>, vector<8x2x256xf32>
    tpu.vector_store %arg9[%c0_10, %c0_11, %c0_12], %15 {strides = array<i32>} : memref<8x2x256xf32, #tpu.memory_space<vmem>>, vector<8x2x256xf32>,
    %c0_13 = arith.constant 0 : index
    %c0_14 = arith.constant 0 : index
    %17 = vector.load %arg5[%c0_13, %c0_14] : memref<64x256xf32, #tpu.memory_space<vmem>>, vector<64x256xf32>
    %c0_15 = arith.constant 0 : index
    %c0_16 = arith.constant 0 : index
    %c0_17 = arith.constant 0 : index
    %18 = vector.load %arg9[%c0_15, %c0_16, %c0_17] : memref<8x2x256xf32, #tpu.memory_space<vmem>>, vector<1x2x256xf32>
    %19 = vector.shape_cast %18 : vector<1x2x256xf32> to vector<2x256xf32>
    %20 = arith.negf %19 : vector<2x256xf32>
    %21 = math.exp %20 : vector<2x256xf32>
    %cst_18 = arith.constant 1.000000e+00 : f32
    %22 = vector.broadcast %cst_18 : f32 to vector<2x256xf32>
    %23 = arith.addf %22, %21 : vector<2x256xf32>
    %24 = arith.divf %22, %23 : vector<2x256xf32>
    %25 = vector.extract_strided_slice %24 {offsets = [0, 0], sizes = [2, 32], strides = [1, 1]} : vector<2x256xf32> to vector<2x32xf32>
    %26 = vector.extract_strided_slice %24 {offsets = [0, 128], sizes = [2, 32], strides = [1, 1]} : vector<2x256xf32> to vector<2x32xf32>
    %cst_19 = arith.constant 2.000000e+00 : f32
    %27 = vector.broadcast %cst_19 : f32 to vector<2x32xf32>
    %28 = arith.mulf %27, %26 : vector<2x32xf32>
    %cst_20 = arith.constant 1.000000e+00 : f32
    %29 = vector.broadcast %cst_20 : f32 to vector<2x32xf32>
    %30 = arith.subf %28, %29 : vector<2x32xf32>
    %31 = arith.mulf %25, %30 : vector<2x32xf32>
    %32 = vector.extract_strided_slice %24 {offsets = [0, 192], sizes = [2, 32], strides = [1, 1]} : vector<2x256xf32> to vector<2x32xf32>
    %33 = math.tanh %31 : vector<2x32xf32>
    %34 = arith.mulf %32, %33 : vector<2x32xf32>
    %cst_21 = arith.constant 0.000000e+00 : f32
    %35 = vector.broadcast %cst_21 : f32 to vector<2x32xf32>
    %36 = tpu.concatenate %34, %35 in 1 : vector<2x32xf32>, vector<2x32xf32> -> vector<2x64xf32>
    %37 = tpu.concatenate %31, %35 in 1 : vector<2x32xf32>, vector<2x32xf32> -> vector<2x64xf32>
    %c1_i32 = arith.constant 1 : i32
    %cst_22 = arith.constant dense<0.000000e+00> : vector<2x256xf32>
    %38 = tpu.matmul %36, %17, %cst_22 {dimension_numbers = #tpu.dot_dimension_numbers<[1], [0], [0], [1], [0, 0, 1, 1], [], []>} : vector<2x64xf32>, vector<64x256xf32>, vector<2x256xf32> -> vector<2x256xf32>
    %39 = arith.index_cast %c1_i32 : i32 to index
    %c0_23 = arith.constant 0 : index
    %c0_24 = arith.constant 0 : index
    %40 = vector.load %arg9[%39, %c0_23, %c0_24] : memref<8x2x256xf32, #tpu.memory_space<vmem>>, vector<1x2x256xf32>
    %41 = vector.shape_cast %40 : vector<1x2x256xf32> to vector<2x256xf32>
    %42 = arith.addf %38, %41 : vector<2x256xf32>
    %43 = arith.negf %42 : vector<2x256xf32>
    %44 = math.exp %43 : vector<2x256xf32>
    %cst_25 = arith.constant 1.000000e+00 : f32
    %45 = vector.broadcast %cst_25 : f32 to vector<2x256xf32>
    %46 = arith.addf %45, %44 : vector<2x256xf32>
    %47 = arith.divf %45, %46 : vector<2x256xf32>
    %48 = vector.extract_strided_slice %47 {offsets = [0, 0], sizes = [2, 64], strides = [1, 1]} : vector<2x256xf32> to vector<2x64xf32>
    %49 = vector.extract_strided_slice %47 {offsets = [0, 64], sizes = [2, 64], strides = [1, 1]} : vector<2x256xf32> to vector<2x64xf32>
    %50 = vector.extract_strided_slice %47 {offsets = [0, 128], sizes = [2, 64], strides = [1, 1]} : vector<2x256xf32> to vector<2x64xf32>
    %cst_26 = arith.constant 2.000000e+00 : f32
    %51 = vector.broadcast %cst_26 : f32 to vector<2x64xf32>
    %52 = arith.mulf %51, %50 : vector<2x64xf32>
    %cst_27 = arith.constant 1.000000e+00 : f32
    %53 = vector.broadcast %cst_27 : f32 to vector<2x64xf32>
    %54 = arith.subf %52, %53 : vector<2x64xf32>
    %55 = vector.extract_strided_slice %47 {offsets = [0, 192], sizes = [2, 64], strides = [1, 1]} : vector<2x256xf32> to vector<2x64xf32>
    %56 = arith.mulf %49, %37 : vector<2x64xf32>
    %57 = arith.mulf %48, %54 : vector<2x64xf32>
    %58 = arith.addf %56, %57 : vector<2x64xf32>
    %59 = math.tanh %58 : vector<2x64xf32>
    %60 = arith.mulf %55, %59 : vector<2x64xf32>
    %c2_i32 = arith.constant 2 : i32
    %cst_28 = arith.constant dense<0.000000e+00> : vector<2x256xf32>
    %61 = tpu.matmul %60, %17, %cst_28 {dimension_numbers = #tpu.dot_dimension_numbers<[1], [0], [0], [1], [0, 0, 1, 1], [], []>} : vector<2x64xf32>, vector<64x256xf32>, vector<2x256xf32> -> vector<2x256xf32>
    %62 = arith.index_cast %c2_i32 : i32 to index
    %c0_29 = arith.constant 0 : index
    %c0_30 = arith.constant 0 : index
    %63 = vector.load %arg9[%62, %c0_29, %c0_30] : memref<8x2x256xf32, #tpu.memory_space<vmem>>, vector<1x2x256xf32>
    %64 = vector.shape_cast %63 : vector<1x2x256xf32> to vector<2x256xf32>
    %65 = arith.addf %61, %64 : vector<2x256xf32>
    %66 = arith.negf %65 : vector<2x256xf32>
    %67 = math.exp %66 : vector<2x256xf32>
    %cst_31 = arith.constant 1.000000e+00 : f32
    %68 = vector.broadcast %cst_31 : f32 to vector<2x256xf32>
    %69 = arith.addf %68, %67 : vector<2x256xf32>
    %70 = arith.divf %68, %69 : vector<2x256xf32>
    %71 = vector.extract_strided_slice %70 {offsets = [0, 0], sizes = [2, 64], strides = [1, 1]} : vector<2x256xf32> to vector<2x64xf32>
    %72 = vector.extract_strided_slice %70 {offsets = [0, 64], sizes = [2, 64], strides = [1, 1]} : vector<2x256xf32> to vector<2x64xf32>
    %73 = vector.extract_strided_slice %70 {offsets = [0, 128], sizes = [2, 64], strides = [1, 1]} : vector<2x256xf32> to vector<2x64xf32>
    %cst_32 = arith.constant 2.000000e+00 : f32
    %74 = vector.broadcast %cst_32 : f32 to vector<2x64xf32>
    %75 = arith.mulf %74, %73 : vector<2x64xf32>
    %cst_33 = arith.constant 1.000000e+00 : f32
    %76 = vector.broadcast %cst_33 : f32 to vector<2x64xf32>
    %77 = arith.subf %75, %76 : vector<2x64xf32>
    %78 = vector.extract_strided_slice %70 {offsets = [0, 192], sizes = [2, 64], strides = [1, 1]} : vector<2x256xf32> to vector<2x64xf32>
    %79 = arith.mulf %72, %58 : vector<2x64xf32>
    %80 = arith.mulf %71, %77 : vector<2x64xf32>
    %81 = arith.addf %79, %80 : vector<2x64xf32>
    %82 = math.tanh %81 : vector<2x64xf32>
    %83 = arith.mulf %78, %82 : vector<2x64xf32>
    %c3_i32 = arith.constant 3 : i32
    %cst_34 = arith.constant dense<0.000000e+00> : vector<2x256xf32>
    %84 = tpu.matmul %83, %17, %cst_34 {dimension_numbers = #tpu.dot_dimension_numbers<[1], [0], [0], [1], [0, 0, 1, 1], [], []>} : vector<2x64xf32>, vector<64x256xf32>, vector<2x256xf32> -> vector<2x256xf32>
    %85 = arith.index_cast %c3_i32 : i32 to index
    %c0_35 = arith.constant 0 : index
    %c0_36 = arith.constant 0 : index
    %86 = vector.load %arg9[%85, %c0_35, %c0_36] : memref<8x2x256xf32, #tpu.memory_space<vmem>>, vector<1x2x256xf32>
    %87 = vector.shape_cast %86 : vector<1x2x256xf32> to vector<2x256xf32>
    %88 = arith.addf %84, %87 : vector<2x256xf32>
    %89 = arith.negf %88 : vector<2x256xf32>
    %90 = math.exp %89 : vector<2x256xf32>
    %cst_37 = arith.constant 1.000000e+00 : f32
    %91 = vector.broadcast %cst_37 : f32 to vector<2x256xf32>
    %92 = arith.addf %91, %90 : vector<2x256xf32>
    %93 = arith.divf %91, %92 : vector<2x256xf32>
    %94 = vector.extract_strided_slice %93 {offsets = [0, 0], sizes = [2, 64], strides = [1, 1]} : vector<2x256xf32> to vector<2x64xf32>
    %95 = vector.extract_strided_slice %93 {offsets = [0, 64], sizes = [2, 64], strides = [1, 1]} : vector<2x256xf32> to vector<2x64xf32>
    %96 = vector.extract_strided_slice %93 {offsets = [0, 128], sizes = [2, 64], strides = [1, 1]} : vector<2x256xf32> to vector<2x64xf32>
    %cst_38 = arith.constant 2.000000e+00 : f32
    %97 = vector.broadcast %cst_38 : f32 to vector<2x64xf32>
    %98 = arith.mulf %97, %96 : vector<2x64xf32>
    %cst_39 = arith.constant 1.000000e+00 : f32
    %99 = vector.broadcast %cst_39 : f32 to vector<2x64xf32>
    %100 = arith.subf %98, %99 : vector<2x64xf32>
    %101 = vector.extract_strided_slice %93 {offsets = [0, 192], sizes = [2, 64], strides = [1, 1]} : vector<2x256xf32> to vector<2x64xf32>
    %102 = arith.mulf %95, %81 : vector<2x64xf32>
    %103 = arith.mulf %94, %100 : vector<2x64xf32>
    %104 = arith.addf %102, %103 : vector<2x64xf32>
    %105 = math.tanh %104 : vector<2x64xf32>
    %106 = arith.mulf %101, %105 : vector<2x64xf32>
    %c4_i32 = arith.constant 4 : i32
    %cst_40 = arith.constant dense<0.000000e+00> : vector<2x256xf32>
    %107 = tpu.matmul %106, %17, %cst_40 {dimension_numbers = #tpu.dot_dimension_numbers<[1], [0], [0], [1], [0, 0, 1, 1], [], []>} : vector<2x64xf32>, vector<64x256xf32>, vector<2x256xf32> -> vector<2x256xf32>
    %108 = arith.index_cast %c4_i32 : i32 to index
    %c0_41 = arith.constant 0 : index
    %c0_42 = arith.constant 0 : index
    %109 = vector.load %arg9[%108, %c0_41, %c0_42] : memref<8x2x256xf32, #tpu.memory_space<vmem>>, vector<1x2x256xf32>
    %110 = vector.shape_cast %109 : vector<1x2x256xf32> to vector<2x256xf32>
    %111 = arith.addf %107, %110 : vector<2x256xf32>
    %112 = arith.negf %111 : vector<2x256xf32>
    %113 = math.exp %112 : vector<2x256xf32>
    %cst_43 = arith.constant 1.000000e+00 : f32
    %114 = vector.broadcast %cst_43 : f32 to vector<2x256xf32>
    %115 = arith.addf %114, %113 : vector<2x256xf32>
    %116 = arith.divf %114, %115 : vector<2x256xf32>
    %117 = vector.extract_strided_slice %116 {offsets = [0, 0], sizes = [2, 64], strides = [1, 1]} : vector<2x256xf32> to vector<2x64xf32>
    %118 = vector.extract_strided_slice %116 {offsets = [0, 64], sizes = [2, 64], strides = [1, 1]} : vector<2x256xf32> to vector<2x64xf32>
    %119 = vector.extract_strided_slice %116 {offsets = [0, 128], sizes = [2, 64], strides = [1, 1]} : vector<2x256xf32> to vector<2x64xf32>
    %cst_44 = arith.constant 2.000000e+00 : f32
    %120 = vector.broadcast %cst_44 : f32 to vector<2x64xf32>
    %121 = arith.mulf %120, %119 : vector<2x64xf32>
    %cst_45 = arith.constant 1.000000e+00 : f32
    %122 = vector.broadcast %cst_45 : f32 to vector<2x64xf32>
    %123 = arith.subf %121, %122 : vector<2x64xf32>
    %124 = vector.extract_strided_slice %116 {offsets = [0, 192], sizes = [2, 64], strides = [1, 1]} : vector<2x256xf32> to vector<2x64xf32>
    %125 = arith.mulf %118, %104 : vector<2x64xf32>
    %126 = arith.mulf %117, %123 : vector<2x64xf32>
    %127 = arith.addf %125, %126 : vector<2x64xf32>
    %128 = math.tanh %127 : vector<2x64xf32>
    %129 = arith.mulf %124, %128 : vector<2x64xf32>
    %c5_i32 = arith.constant 5 : i32
    %cst_46 = arith.constant dense<0.000000e+00> : vector<2x256xf32>
    %130 = tpu.matmul %129, %17, %cst_46 {dimension_numbers = #tpu.dot_dimension_numbers<[1], [0], [0], [1], [0, 0, 1, 1], [], []>} : vector<2x64xf32>, vector<64x256xf32>, vector<2x256xf32> -> vector<2x256xf32>
    %131 = arith.index_cast %c5_i32 : i32 to index
    %c0_47 = arith.constant 0 : index
    %c0_48 = arith.constant 0 : index
    %132 = vector.load %arg9[%131, %c0_47, %c0_48] : memref<8x2x256xf32, #tpu.memory_space<vmem>>, vector<1x2x256xf32>
    %133 = vector.shape_cast %132 : vector<1x2x256xf32> to vector<2x256xf32>
    %134 = arith.addf %130, %133 : vector<2x256xf32>
    %135 = arith.negf %134 : vector<2x256xf32>
    %136 = math.exp %135 : vector<2x256xf32>
    %cst_49 = arith.constant 1.000000e+00 : f32
    %137 = vector.broadcast %cst_49 : f32 to vector<2x256xf32>
    %138 = arith.addf %137, %136 : vector<2x256xf32>
    %139 = arith.divf %137, %138 : vector<2x256xf32>
    %140 = vector.extract_strided_slice %139 {offsets = [0, 0], sizes = [2, 64], strides = [1, 1]} : vector<2x256xf32> to vector<2x64xf32>
    %141 = vector.extract_strided_slice %139 {offsets = [0, 64], sizes = [2, 64], strides = [1, 1]} : vector<2x256xf32> to vector<2x64xf32>
    %142 = vector.extract_strided_slice %139 {offsets = [0, 128], sizes = [2, 64], strides = [1, 1]} : vector<2x256xf32> to vector<2x64xf32>
    %cst_50 = arith.constant 2.000000e+00 : f32
    %143 = vector.broadcast %cst_50 : f32 to vector<2x64xf32>
    %144 = arith.mulf %143, %142 : vector<2x64xf32>
    %cst_51 = arith.constant 1.000000e+00 : f32
    %145 = vector.broadcast %cst_51 : f32 to vector<2x64xf32>
    %146 = arith.subf %144, %145 : vector<2x64xf32>
    %147 = vector.extract_strided_slice %139 {offsets = [0, 192], sizes = [2, 64], strides = [1, 1]} : vector<2x256xf32> to vector<2x64xf32>
    %148 = arith.mulf %141, %127 : vector<2x64xf32>
    %149 = arith.mulf %140, %146 : vector<2x64xf32>
    %150 = arith.addf %148, %149 : vector<2x64xf32>
    %151 = math.tanh %150 : vector<2x64xf32>
    %152 = arith.mulf %147, %151 : vector<2x64xf32>
    %c6_i32 = arith.constant 6 : i32
    %cst_52 = arith.constant dense<0.000000e+00> : vector<2x256xf32>
    %153 = tpu.matmul %152, %17, %cst_52 {dimension_numbers = #tpu.dot_dimension_numbers<[1], [0], [0], [1], [0, 0, 1, 1], [], []>} : vector<2x64xf32>, vector<64x256xf32>, vector<2x256xf32> -> vector<2x256xf32>
    %154 = arith.index_cast %c6_i32 : i32 to index
    %c0_53 = arith.constant 0 : index
    %c0_54 = arith.constant 0 : index
    %155 = vector.load %arg9[%154, %c0_53, %c0_54] : memref<8x2x256xf32, #tpu.memory_space<vmem>>, vector<1x2x256xf32>
    %156 = vector.shape_cast %155 : vector<1x2x256xf32> to vector<2x256xf32>
    %157 = arith.addf %153, %156 : vector<2x256xf32>
    %158 = arith.negf %157 : vector<2x256xf32>
    %159 = math.exp %158 : vector<2x256xf32>
    %cst_55 = arith.constant 1.000000e+00 : f32
    %160 = vector.broadcast %cst_55 : f32 to vector<2x256xf32>
    %161 = arith.addf %160, %159 : vector<2x256xf32>
    %162 = arith.divf %160, %161 : vector<2x256xf32>
    %163 = vector.extract_strided_slice %162 {offsets = [0, 0], sizes = [2, 64], strides = [1, 1]} : vector<2x256xf32> to vector<2x64xf32>
    %164 = vector.extract_strided_slice %162 {offsets = [0, 64], sizes = [2, 64], strides = [1, 1]} : vector<2x256xf32> to vector<2x64xf32>
    %165 = vector.extract_strided_slice %162 {offsets = [0, 128], sizes = [2, 64], strides = [1, 1]} : vector<2x256xf32> to vector<2x64xf32>
    %cst_56 = arith.constant 2.000000e+00 : f32
    %166 = vector.broadcast %cst_56 : f32 to vector<2x64xf32>
    %167 = arith.mulf %166, %165 : vector<2x64xf32>
    %cst_57 = arith.constant 1.000000e+00 : f32
    %168 = vector.broadcast %cst_57 : f32 to vector<2x64xf32>
    %169 = arith.subf %167, %168 : vector<2x64xf32>
    %170 = vector.extract_strided_slice %162 {offsets = [0, 192], sizes = [2, 64], strides = [1, 1]} : vector<2x256xf32> to vector<2x64xf32>
    %171 = arith.mulf %164, %150 : vector<2x64xf32>
    %172 = arith.mulf %163, %169 : vector<2x64xf32>
    %173 = arith.addf %171, %172 : vector<2x64xf32>
    %174 = math.tanh %173 : vector<2x64xf32>
    %175 = arith.mulf %170, %174 : vector<2x64xf32>
    %c7_i32 = arith.constant 7 : i32
    %cst_58 = arith.constant dense<0.000000e+00> : vector<2x256xf32>
    %176 = tpu.matmul %175, %17, %cst_58 {dimension_numbers = #tpu.dot_dimension_numbers<[1], [0], [0], [1], [0, 0, 1, 1], [], []>} : vector<2x64xf32>, vector<64x256xf32>, vector<2x256xf32> -> vector<2x256xf32>
    %177 = arith.index_cast %c7_i32 : i32 to index
    %c0_59 = arith.constant 0 : index
    %c0_60 = arith.constant 0 : index
    %178 = vector.load %arg9[%177, %c0_59, %c0_60] : memref<8x2x256xf32, #tpu.memory_space<vmem>>, vector<1x2x256xf32>
    %179 = vector.shape_cast %178 : vector<1x2x256xf32> to vector<2x256xf32>
    %180 = arith.addf %176, %179 : vector<2x256xf32>
    %181 = arith.negf %180 : vector<2x256xf32>
    %182 = math.exp %181 : vector<2x256xf32>
    %cst_61 = arith.constant 1.000000e+00 : f32
    %183 = vector.broadcast %cst_61 : f32 to vector<2x256xf32>
    %184 = arith.addf %183, %182 : vector<2x256xf32>
    %185 = arith.divf %183, %184 : vector<2x256xf32>
    %186 = vector.extract_strided_slice %185 {offsets = [0, 0], sizes = [2, 64], strides = [1, 1]} : vector<2x256xf32> to vector<2x64xf32>
    %187 = vector.extract_strided_slice %185 {offsets = [0, 64], sizes = [2, 64], strides = [1, 1]} : vector<2x256xf32> to vector<2x64xf32>
    %188 = vector.extract_strided_slice %185 {offsets = [0, 128], sizes = [2, 64], strides = [1, 1]} : vector<2x256xf32> to vector<2x64xf32>
    %cst_62 = arith.constant 2.000000e+00 : f32
    %189 = vector.broadcast %cst_62 : f32 to vector<2x64xf32>
    %190 = arith.mulf %189, %188 : vector<2x64xf32>
    %cst_63 = arith.constant 1.000000e+00 : f32
    %191 = vector.broadcast %cst_63 : f32 to vector<2x64xf32>
    %192 = arith.subf %190, %191 : vector<2x64xf32>
    %193 = vector.extract_strided_slice %185 {offsets = [0, 192], sizes = [2, 64], strides = [1, 1]} : vector<2x256xf32> to vector<2x64xf32>
    %194 = arith.mulf %187, %173 : vector<2x64xf32>
    %195 = arith.mulf %186, %192 : vector<2x64xf32>
    %196 = arith.addf %194, %195 : vector<2x64xf32>
    %197 = math.tanh %196 : vector<2x64xf32>
    %198 = arith.mulf %193, %197 : vector<2x64xf32>
    %c7_i32_64 = arith.constant 7 : i32
    %cst_65 = arith.constant dense<0.000000e+00> : vector<2x256xf32>
    %199 = tpu.matmul %198, %17, %cst_65 {dimension_numbers = #tpu.dot_dimension_numbers<[1], [0], [0], [1], [0, 0, 1, 1], [], []>} : vector<2x64xf32>, vector<64x256xf32>, vector<2x256xf32> -> vector<2x256xf32>
    %c7 = arith.constant 7 : index
    %c0_66 = arith.constant 0 : index
    %c0_67 = arith.constant 0 : index
    %200 = vector.load %arg9[%c7, %c0_66, %c0_67] : memref<8x2x256xf32, #tpu.memory_space<vmem>>, vector<1x2x256xf32>
    %201 = vector.shape_cast %200 : vector<1x2x256xf32> to vector<2x256xf32>
    %202 = arith.addf %199, %201 : vector<2x256xf32>
    %203 = arith.negf %202 : vector<2x256xf32>
    %204 = math.exp %203 : vector<2x256xf32>
    %cst_68 = arith.constant 1.000000e+00 : f32
    %205 = vector.broadcast %cst_68 : f32 to vector<2x256xf32>
    %206 = arith.addf %205, %204 : vector<2x256xf32>
    %207 = arith.divf %205, %206 : vector<2x256xf32>
    %208 = vector.extract_strided_slice %207 {offsets = [0, 0], sizes = [2, 64], strides = [1, 1]} : vector<2x256xf32> to vector<2x64xf32>
    %209 = vector.extract_strided_slice %207 {offsets = [0, 64], sizes = [2, 64], strides = [1, 1]} : vector<2x256xf32> to vector<2x64xf32>
    %210 = vector.extract_strided_slice %207 {offsets = [0, 128], sizes = [2, 64], strides = [1, 1]} : vector<2x256xf32> to vector<2x64xf32>
    %cst_69 = arith.constant 2.000000e+00 : f32
    %211 = vector.broadcast %cst_69 : f32 to vector<2x64xf32>
    %212 = arith.mulf %211, %210 : vector<2x64xf32>
    %cst_70 = arith.constant 1.000000e+00 : f32
    %213 = vector.broadcast %cst_70 : f32 to vector<2x64xf32>
    %214 = arith.subf %212, %213 : vector<2x64xf32>
    %215 = vector.extract_strided_slice %207 {offsets = [0, 192], sizes = [2, 64], strides = [1, 1]} : vector<2x256xf32> to vector<2x64xf32>
    %216 = arith.mulf %209, %196 : vector<2x64xf32>
    %217 = arith.mulf %208, %214 : vector<2x64xf32>
    %218 = arith.addf %216, %217 : vector<2x64xf32>
    %219 = math.tanh %218 : vector<2x64xf32>
    %220 = arith.mulf %215, %219 : vector<2x64xf32>
    %221 = vector.extract_strided_slice %220 {offsets = [0, 32], sizes = [2, 32], strides = [1, 1]} : vector<2x64xf32> to vector<2x32xf32>
    %222 = vector.extract_strided_slice %198 {offsets = [0, 0], sizes = [2, 32], strides = [1, 1]} : vector<2x64xf32> to vector<2x32xf32>
    %223 = tpu.concatenate %222, %221 in 1 : vector<2x32xf32>, vector<2x32xf32> -> vector<2x64xf32>
    %c0_71 = arith.constant 0 : index
    %c0_72 = arith.constant 0 : index
    %224 = vector.load %arg6[%c0_71, %c0_72] : memref<1x64xf32, #tpu.memory_space<vmem>>, vector<1x64xf32>
    %225 = vector.broadcast %224 : vector<1x64xf32> to vector<2x64xf32>
    %226 = arith.mulf %223, %225 : vector<2x64xf32>
    %cst_73 = arith.constant dense<0.000000e+00> : vector<2xf32>
    %227 = vector.multi_reduction <add>, %226, %cst_73 [1] : vector<2x64xf32> to vector<2xf32>
    %228 = vector.shape_cast %227 : vector<2xf32> to vector<2x1xf32>
    %c0_74 = arith.constant 0 : index
    %229 = memref.load %arg7[%c0_74] : memref<1xf32, #tpu.memory_space<smem>>
    %230 = vector.broadcast %229 : f32 to vector<2x1xf32>
    %231 = arith.addf %228, %230 : vector<2x1xf32>
    %c0_75 = arith.constant 0 : index
    %c0_76 = arith.constant 0 : index
    %232 = vector.load %arg8[%c0_75, %c0_76] : memref<2x1xf32, #tpu.memory_space<vmem>>, vector<2x1xf32>
    tpu.vector_store %arg8[%c0_75, %c0_76], %231 {strides = array<i32>} : memref<2x1xf32, #tpu.memory_space<vmem>>, vector<2x1xf32>,
    return
  }
}

</mosaic_0001>

<llo_original>
// kernel: tpu_custom_call.1
$region0: #{tpu_custom_call.1}
  #allocation0 [shape = 'u32[]', space=smem, size = 0x4, offset = 0x4, fixed_abs, tag = 'smem constant byte address 0x4 - core index']
  #allocation1 [shape = 'u32[144,128]{1,0:T(1,128)}', space=vmem, size = 0x12000, scoped, tag = 'internal scratch']
  #allocation2 [shape = 'f32[8,2,256]{2,1,0:T(2,128)}', space=vmem, size = 0x4000, scoped, tag = 'scratch operand']
  #allocation3 [shape = 'f32[1]{0:T(128)S(6)}', space=smem, size = 0x200, scoped, tag = 'scoped memory for tpu_custom_call.1']
  %s0 = inlined_call_operand.vmem [shape: f32[16,1], index: 0, kind: input, shape index: {}]
  %s1 = inlined_call_operand.vmem [shape: f32[1,32], index: 1, kind: input, shape index: {}]
  %s2 = inlined_call_operand.vmem [shape: f32[1,32], index: 2, kind: input, shape index: {}]
  %s3 = inlined_call_operand.hbm [shape: f32[32,256], index: 3, kind: input, shape index: {}]
  %s4 = inlined_call_operand.vmem [shape: f32[1,256], index: 4, kind: input, shape index: {}]
  %s5 = inlined_call_operand.hbm [shape: f32[64,256], index: 5, kind: input, shape index: {}]
  %s6 = inlined_call_operand.vmem [shape: f32[1,64], index: 6, kind: input, shape index: {}]
  %s7 = inlined_call_operand.<no memory space> [shape: f32[1], index: 7, kind: input, shape index: {}]
  %s8 = inlined_call_operand.vmem [shape: f32[2,1], index: 8, kind: output, shape index: {}]
  %s9 = sld [smem:[#allocation0]]
  $region50: #{tpu_custom_call.1} parent=0
    _
  %s11 = ssub.s32 1, %s9
  %s12 = scalar_select 0, %s11, %s9
  %13 = sst [smem:[#allocation3]] %s7
  $region1: #{tpu_custom_call.1} parent=0
    #allocation4 [shape = 'u8[32768]{0}', space=vmem, size = 0x8000, scoped, tag = 'input window, operand 3, single buffered']
    #allocation5 [shape = 's32[1]{0}', space=sflag, size = 0x4, scoped, tag = 'scoped memory for tpu_custom_call.1']
    #allocation6 [shape = 'u8[65536]{0}', space=vmem, size = 0x10000, scoped, tag = 'input window, operand 5, single buffered']
    #allocation7 [shape = 's32[1]{0}', space=sflag, size = 0x4, scoped, tag = 'scoped memory for tpu_custom_call.1']
    %14 = vsyncpa [#allocation5], 0
    %15 = vsyncpa [#allocation7], 0
    // Predicated region
    $region2: #{tpu_custom_call.1} parent=1 // pred_check
      _
    $region3: #{tpu_custom_call.1} parent=1 // pred_check_branch
      %17 = sbr.rel (0) target = $region5
    $region4: #{tpu_custom_call.1} parent=1 // pred_region
      _
    $region5: #{tpu_custom_call.1} parent=1 // pred_fallthru
      _
    // Predicated region
    $region6: #{tpu_custom_call.1} parent=1 // pred_check
      _
    $region7: #{tpu_custom_call.1} parent=1 // pred_check_branch
      %19 = sbr.rel (0) target = $region9
    $region8: #{tpu_custom_call.1} parent=1 // pred_region
      _
    $region9: #{tpu_custom_call.1} parent=1 // pred_fallthru
      _
    // Predicated region
    $region10: #{tpu_custom_call.1} parent=1 // pred_check
      _
    $region11: #{tpu_custom_call.1} parent=1 // pred_check_branch
      %21 = sbr.rel (0) target = $region13
    $region12: #{tpu_custom_call.1} parent=1 // pred_region
      _
    $region13: #{tpu_custom_call.1} parent=1 // pred_fallthru
      _
    // Predicated region
    $region14: #{tpu_custom_call.1} parent=1 // pred_check
      _
    $region15: #{tpu_custom_call.1} parent=1 // pred_check_branch
      %23 = sbr.rel (0) target = $region17
    $region16: #{tpu_custom_call.1} parent=1 // pred_region
      %s25 = ssub.s32 1024, 1024
      %26 = vsyncadd [#allocation5], %s25
      %s27 = sshll.u32 [#allocation4], 4
      %s28 = int_to_ptr.vmem [resolvable:$true] %s27
      %33 = dma.hbm_to_vmem [thread:$0]  %s3, 1024, %s28, [#allocation5], 256, 256, 16
    $region17: #{tpu_custom_call.1} parent=1 // pred_fallthru
      _
    // Predicated region
    $region18: #{tpu_custom_call.1} parent=1 // pred_check
      _
    $region19: #{tpu_custom_call.1} parent=1 // pred_check_branch
      %35 = sbr.rel (0) target = $region21
    $region20: #{tpu_custom_call.1} parent=1 // pred_region
      _
    $region21: #{tpu_custom_call.1} parent=1 // pred_fallthru
      _
    // Predicated region
    $region22: #{tpu_custom_call.1} parent=1 // pred_check
      _
    $region23: #{tpu_custom_call.1} parent=1 // pred_check_branch
      %37 = sbr.rel (0) target = $region25
    $region24: #{tpu_custom_call.1} parent=1 // pred_region
      %s39 = ssub.s32 2048, 2048
      %40 = vsyncadd [#allocation7], %s39
      %s41 = sshll.u32 [#allocation6], 4
      %s42 = int_to_ptr.vmem [resolvable:$true] %s41
      %47 = dma.hbm_to_vmem [thread:$0]  %s5, 2048, %s42, [#allocation7], 256, 256, 16
    $region25: #{tpu_custom_call.1} parent=1 // pred_fallthru
      _
    // Predicated region
    $region26: #{tpu_custom_call.1} parent=1 // pred_check
      _
    $region27: #{tpu_custom_call.1} parent=1 // pred_check_branch
      %49 = sbr.rel (0) target = $region29
    $region28: #{tpu_custom_call.1} parent=1 // pred_region
      _
    $region29: #{tpu_custom_call.1} parent=1 // pred_fallthru
      _
    // Predicated region
    $region30: #{tpu_custom_call.1} parent=1 // pred_check
      _
    $region31: #{tpu_custom_call.1} parent=1 // pred_check_branch
      %51 = sbr.rel (0) target = $region33
    $region32: #{tpu_custom_call.1} parent=1 // pred_region
      _
    $region33: #{tpu_custom_call.1} parent=1 // pred_fallthru
      _
    // Predicated region
    $region34: #{tpu_custom_call.1} parent=1 // pred_check
      _
    $region35: #{tpu_custom_call.1} parent=1 // pred_check_branch
      %53 = sbr.rel (0) target = $region37
    $region36: #{tpu_custom_call.1} parent=1 // pred_region
      %54 = dma.done [#allocation5], 1024
    $region37: #{tpu_custom_call.1} parent=1 // pred_fallthru
      _
    // Predicated region
    $region38: #{tpu_custom_call.1} parent=1 // pred_check
      _
    $region39: #{tpu_custom_call.1} parent=1 // pred_check_branch
      %56 = sbr.rel (0) target = $region41
    $region40: #{tpu_custom_call.1} parent=1 // pred_region
      %57 = dma.done [#allocation7], 2048
    $region41: #{tpu_custom_call.1} parent=1 // pred_fallthru
      _
    %v58 = vld [vmem:[%s0] sm:$0xff]
    %v59 = vld [vmem:[%s0 + $0x8] sm:$0xff]
    %v60 = vld [vmem:[%s1] sm:$0x1]
    %62 = vset.pattern.permute.xlu0 0
    %63 = vperm.xlu0 %62, %v58
    %v64 = vpop.permute.xlu0 %63
    %67 = vset.pattern.permute.xlu0 0
    %68 = vperm.xlu0 %67, %v59
    %v69 = vpop.permute.xlu0 %68
    %v72 = vlaneseq
    %v73 = vshrl.u32 %v72, 7
    %v74 = vsub.s32 0, %v73
    %v75 = vrot.slane %v60, %v74
    %v77 = vmul.f32 %v64, %v75
    %v78 = vmul.f32 %v69, %v75
    %v79 = vld [vmem:[%s2] sm:$0x1]
    %v81 = vlaneseq
    %v82 = vshrl.u32 %v81, 7
    %v83 = vsub.s32 0, %v82
    %v84 = vrot.slane %v79, %v83
    %v86 = vadd.f32 %v77, %v84
    %v87 = vadd.f32 %v78, %v84
    %v88 = vmax.f32 %v86, 0.0
    %v89 = vmax.f32 %v87, 0.0
    %v90 = vld [vmem:[#allocation4] sm:$0xff]
    %v91 = vld [vmem:[#allocation4 + $0x8] sm:$0xff]
    %v92 = vld [vmem:[#allocation4 + $0x10] sm:$0xff]
    %v93 = vld [vmem:[#allocation4 + $0x18] sm:$0xff]
    %v94 = vld [vmem:[#allocation4 + $0x20] sm:$0xff]
    %v95 = vld [vmem:[#allocation4 + $0x28] sm:$0xff]
    %v96 = vld [vmem:[#allocation4 + $0x30] sm:$0xff]
    %v97 = vld [vmem:[#allocation4 + $0x38] sm:$0xff]
    %v98 = vld [vmem:[%s4] sm:$0x3]
    %v100 = vlaneseq
    %v101 = vshrl.u32 %v100, 7
    %v102 = vsub.s32 0, %v101
    %v103 = vrot.slane %v98, %v102
    %v104 = vlaneseq
    %v105 = vshrl.u32 %v104, 7
    %v106 = vsub.s32 1, %v105
    %v107 = vrot.slane %v98, %v106
    %vm110 = vcmask 261120
    %v112 = vsel %vm110, %v88, 0
    %v115 = vsel %vm110, %v89, 0
    %117 = vmatprep.subr.mxu0 %v91
    %118 = vmatpush1.msra.mxu0 %v90
    %119 = vmatprep.subr.mxu0 %v93
    %120 = vmatpush1.msra.mxu0 %v92
    %121 = vmatprep.subr.mxu0 %v95
    %122 = vmatpush1.msra.mxu0 %v94
    %123 = vmatprep.subr.mxu0 %v97
    %124 = vmatpush1.msra.mxu0 %v96
    %125 = vmatprep.subr.mxu0 0.0
    %126 = vmatpush1.msra.mxu0 0.0
    %127 = vmatprep.subr.mxu0 0.0
    %128 = vmatpush1.msra.mxu0 0.0
    %129 = vmatprep.subr.mxu0 0.0
    %130 = vmatpush1.msra.mxu0 0.0
    %131 = vmatprep.subr.mxu0 0.0
    %132 = vmatpush1.msra.mxu0 0.0
    %133 = vmatprep.subr.mxu0 0.0
    %134 = vmatpush1.msra.mxu0 0.0
    %135 = vmatprep.subr.mxu0 0.0
    %136 = vmatpush1.msra.mxu0 0.0
    %137 = vmatprep.subr.mxu0 0.0
    %138 = vmatpush1.msra.mxu0 0.0
    %139 = vmatprep.subr.mxu0 0.0
    %140 = vmatpush1.msra.mxu0 0.0
    %141 = vmatprep.subr.mxu0 0.0
    %142 = vmatpush1.msra.mxu0 0.0
    %143 = vmatprep.subr.mxu0 0.0
    %144 = vmatpush1.msra.mxu0 0.0
    %145 = vmatprep.subr.mxu0 0.0
    %146 = vmatpush1.msra.mxu0 0.0
    %147 = vmatprep.subr.mxu0 0.0
    %148 = vmatpush1.msra.mxu0 0.0
    %149 = vmatprep.subr.mxu0 0.0
    %150 = vmatpush1.msra.mxu0 0.0
    %151 = vmatprep.subr.mxu0 0.0
    %152 = vmatpush1.msra.mxu0 0.0
    %153 = vmatprep.subr.mxu0 0.0
    %154 = vmatpush1.msra.mxu0 0.0
    %155 = vmatprep.subr.mxu0 0.0
    %156 = vmatpush1.msra.mxu0 0.0
    %157 = vmatprep.subr.mxu0 0.0
    %158 = vmatpush1.msra.mxu0 0.0
    %159 = vmatprep.subr.mxu0 0.0
    %160 = vmatpush1.msra.mxu0 0.0
    %161 = vmatprep.subr.mxu0 0.0
    %162 = vmatpush1.msra.mxu0 0.0
    %163 = vmatprep.subr.mxu0 0.0
    %164 = vmatpush1.msra.mxu0 0.0
    %165 = vmatprep.subr.mxu0 0.0
    %166 = vmatpush1.msra.mxu0 0.0
    %167 = vmatprep.subr.mxu0 0.0
    %168 = vmatpush1.msra.mxu0 0.0
    %169 = vmatprep.subr.mxu0 0.0
    %170 = vmatpush1.msra.mxu0 0.0
    %171 = vmatprep.subr.mxu0 0.0
    %172 = vmatpush1.msra.mxu0 0.0
    %173 = vmatprep.subr.mxu0 0.0
    %174 = vmatpush1.msra.mxu0 0.0
    %175 = vmatprep.subr.mxu0 0.0
    %176 = vmatpush1.msra.mxu0 0.0
    %177 = vmatprep.subr.mxu0 0.0
    %178 = vmatpush1.msra.mxu0 0.0
    %179 = vmatprep.subr.mxu0 0.0
    %180 = vmatpush1.msra.mxu0 0.0
    %181 = vmatprep.mubr.f32.mxu0 0.0
    %182 = vmatmul.mubr.f32.gmra.mrb[0].mxu0 %v112
    %v183 = vpop.f32.mrb[0].mxu0
    %v184 = vadd.f32 %v103, %v183
    %v185 = vpop.f32.mrb[0].mxu0
    %v186 = vadd.f32 %v107, %v185
    %187 = vmatprep.mubr.f32.mxu0 0.0
    %188 = vmatmul.mubr.f32.gmra.mrb[0].mxu0 %v115
    %v189 = vpop.f32.mrb[0].mxu0
    %v190 = vadd.f32 %v103, %v189
    %v191 = vpop.f32.mrb[0].mxu0
    %v192 = vadd.f32 %v107, %v191
    %193 = vdwg.mxu0
    %v198 = vcombine.low %v184, %v186
    %v199 = vcombine.high %v184, %v186
    %v201 = vunpack.c.l.s4 1983009808
    %v202 = vunpack.c.0.s8 %v201
    %v203 = vlaneseq
    %v204 = vshrl.u32 %v203, 7
    %v205 = vsub.s32 %v202, %v204
    %v206 = vrot.slane %v198, %v205
    %v208 = vunpack.c.l.s4 1983009808
    %v209 = vunpack.c.0.s8 %v208
    %v210 = vlaneseq
    %v211 = vshrl.u32 %v210, 7
    %v212 = vsub.s32 %v209, %v211
    %v213 = vrot.slane %v199, %v212
    %v214 = vcombine.high %v206, %v206
    %v215 = vcombine.high %v213, %v213
    %v216 = vcombine.low %v190, %v192
    %v217 = vcombine.high %v190, %v192
    %v219 = vunpack.c.l.s4 1983009808
    %v220 = vunpack.c.0.s8 %v219
    %v221 = vlaneseq
    %v222 = vshrl.u32 %v221, 7
    %v223 = vsub.s32 %v220, %v222
    %v224 = vrot.slane %v216, %v223
    %v226 = vunpack.c.l.s4 1983009808
    %v227 = vunpack.c.0.s8 %v226
    %v228 = vlaneseq
    %v229 = vshrl.u32 %v228, 7
    %v230 = vsub.s32 %v227, %v229
    %v231 = vrot.slane %v217, %v230
    %v232 = vcombine.high %v224, %v224
    %v233 = vcombine.high %v231, %v231
    %242 = vst [vmem:[#allocation2] sm:$0xf] %v206
    %243 = vst [vmem:[#allocation2 + $0x4] sm:$0xf] %v214
    %244 = vst [vmem:[#allocation2 + $0x8] sm:$0xf] %v213
    %245 = vst [vmem:[#allocation2 + $0xc] sm:$0xf] %v215
    %246 = vst [vmem:[#allocation2 + $0x10] sm:$0xf] %v224
    %247 = vst [vmem:[#allocation2 + $0x14] sm:$0xf] %v232
    %248 = vst [vmem:[#allocation2 + $0x18] sm:$0xf] %v231
    %249 = vst [vmem:[#allocation2 + $0x1c] sm:$0xf] %v233
    %v250 = vld [vmem:[#allocation6] sm:$0xff]
    %v251 = vld [vmem:[#allocation6 + $0x8] sm:$0xff]
    %v252 = vld [vmem:[#allocation6 + $0x10] sm:$0xff]
    %v253 = vld [vmem:[#allocation6 + $0x18] sm:$0xff]
    %v254 = vld [vmem:[#allocation6 + $0x20] sm:$0xff]
    %v255 = vld [vmem:[#allocation6 + $0x28] sm:$0xff]
    %v256 = vld [vmem:[#allocation6 + $0x30] sm:$0xff]
    %v257 = vld [vmem:[#allocation6 + $0x38] sm:$0xff]
    %v258 = vld [vmem:[#allocation6 + $0x40] sm:$0xff]
    %v259 = vld [vmem:[#allocation6 + $0x48] sm:$0xff]
    %v260 = vld [vmem:[#allocation6 + $0x50] sm:$0xff]
    %v261 = vld [vmem:[#allocation6 + $0x58] sm:$0xff]
    %v262 = vld [vmem:[#allocation6 + $0x60] sm:$0xff]
    %v263 = vld [vmem:[#allocation6 + $0x68] sm:$0xff]
    %v264 = vld [vmem:[#allocation6 + $0x70] sm:$0xff]
    %v265 = vld [vmem:[#allocation6 + $0x78] sm:$0xff]
    %v266 = vld [vmem:[#allocation2] sm:$0xf]
    %v267 = vxor.u32 %v266, 2147483648
    %v268 = vmul.f32 %v267, 1.442695
    %v269 = vpow.pop %v268
    %v270 = vadd.f32 %v269, 1.0
    %v271 = vrcp.pop %v270
    %v272 = vmul.f32 1.0, %v271
    %v274 = vrot.slane %v272, 2
    %v276 = vmul.f32 %v274, 2.0
    %v277 = vsub.f32 %v276, 1.0
    %v278 = vmul.f32 %v272, %v277
    %v279 = vtanh.pop %v278
    %280 = vrot.lane.b32.xlu0 %v272, 64
    %v281 = vpop.permute.xlu0 %280
    %v282 = vrot.slane %v281, 2
    %v284 = vmul.f32 %v282, %v279
    %v285 = vsel %vm110, %v284, 0.0
    %v286 = vsel %vm110, %v278, 0.0
    %s287 = scalar_lea.vmem [#allocation2], 4
    %v288 = vld [vmem:[%s287] sm:$0xf]
    %v291 = vunpack.c.l.s4 1983009808
    %v292 = vunpack.c.0.s8 %v291
    %v293 = vlaneseq
    %v294 = vshrl.u32 %v293, 7
    %v295 = vsub.s32 %v292, %v294
    %v296 = vrot.slane %v288, %v295
    %v297 = vcombine.high %v296, %v296
    %vm300 = vcmask 523264
    %v302 = vsel %vm300, %v285, 0
    %304 = vmatprep.subr.mxu0 %v251
    %305 = vmatpush1.msra.mxu0 %v250
    %306 = vmatprep.subr.mxu0 %v253
    %307 = vmatpush1.msra.mxu0 %v252
    %308 = vmatprep.subr.mxu0 %v255
    %309 = vmatpush1.msra.mxu0 %v254
    %310 = vmatprep.subr.mxu0 %v257
    %311 = vmatpush1.msra.mxu0 %v256
    %312 = vmatprep.subr.mxu0 %v259
    %313 = vmatpush1.msra.mxu0 %v258
    %314 = vmatprep.subr.mxu0 %v261
    %315 = vmatpush1.msra.mxu0 %v260
    %316 = vmatprep.subr.mxu0 %v263
    %317 = vmatpush1.msra.mxu0 %v262
    %318 = vmatprep.subr.mxu0 %v265
    %319 = vmatpush1.msra.mxu0 %v264
    %320 = vmatprep.subr.mxu0 0.0
    %321 = vmatpush1.msra.mxu0 0.0
    %322 = vmatprep.subr.mxu0 0.0
    %323 = vmatpush1.msra.mxu0 0.0
    %324 = vmatprep.subr.mxu0 0.0
    %325 = vmatpush1.msra.mxu0 0.0
    %326 = vmatprep.subr.mxu0 0.0
    %327 = vmatpush1.msra.mxu0 0.0
    %328 = vmatprep.subr.mxu0 0.0
    %329 = vmatpush1.msra.mxu0 0.0
    %330 = vmatprep.subr.mxu0 0.0
    %331 = vmatpush1.msra.mxu0 0.0
    %332 = vmatprep.subr.mxu0 0.0
    %333 = vmatpush1.msra.mxu0 0.0
    %334 = vmatprep.subr.mxu0 0.0
    %335 = vmatpush1.msra.mxu0 0.0
    %336 = vmatprep.subr.mxu0 0.0
    %337 = vmatpush1.msra.mxu0 0.0
    %338 = vmatprep.subr.mxu0 0.0
    %339 = vmatpush1.msra.mxu0 0.0
    %340 = vmatprep.subr.mxu0 0.0
    %341 = vmatpush1.msra.mxu0 0.0
    %342 = vmatprep.subr.mxu0 0.0
    %343 = vmatpush1.msra.mxu0 0.0
    %344 = vmatprep.subr.mxu0 0.0
    %345 = vmatpush1.msra.mxu0 0.0
    %346 = vmatprep.subr.mxu0 0.0
    %347 = vmatpush1.msra.mxu0 0.0
    %348 = vmatprep.subr.mxu0 0.0
    %349 = vmatpush1.msra.mxu0 0.0
    %350 = vmatprep.subr.mxu0 0.0
    %351 = vmatpush1.msra.mxu0 0.0
    %352 = vmatprep.subr.mxu0 0.0
    %353 = vmatpush1.msra.mxu0 0.0
    %354 = vmatprep.subr.mxu0 0.0
    %355 = vmatpush1.msra.mxu0 0.0
    %356 = vmatprep.subr.mxu0 0.0
    %357 = vmatpush1.msra.mxu0 0.0
    %358 = vmatprep.subr.mxu0 0.0
    %359 = vmatpush1.msra.mxu0 0.0
    %360 = vmatprep.subr.mxu0 0.0
    %361 = vmatpush1.msra.mxu0 0.0
    %362 = vmatprep.subr.mxu0 0.0
    %363 = vmatpush1.msra.mxu0 0.0
    %364 = vmatprep.subr.mxu0 0.0
    %365 = vmatpush1.msra.mxu0 0.0
    %366 = vmatprep.subr.mxu0 0.0
    %367 = vmatpush1.msra.mxu0 0.0
    %368 = vmatprep.mubr.f32.mxu0 0.0
    %369 = vmatmul.mubr.f32.gmra.mrb[0].mxu0 %v302
    %v370 = vpop.f32.mrb[0].mxu0
    %v371 = vadd.f32 %v296, %v370
    %v372 = vpop.f32.mrb[0].mxu0
    %v373 = vadd.f32 %v297, %v372
    %374 = vdwg.mxu0
    %v375 = vxor.u32 %v371, 2147483648
    %v376 = vxor.u32 %v373, 2147483648
    %v377 = vmul.f32 %v375, 1.442695
    %v378 = vpow.pop %v377
    %v379 = vmul.f32 %v376, 1.442695
    %v380 = vpow.pop %v379
    %v381 = vadd.f32 %v378, 1.0
    %v382 = vadd.f32 %v380, 1.0
    %v383 = vrcp.pop %v381
    %v384 = vmul.f32 1.0, %v383
    %v385 = vrcp.pop %v382
    %v386 = vmul.f32 1.0, %v385
    %v387 = vmul.f32 %v386, 2.0
    %v388 = vsub.f32 %v387, 1.0
    %390 = vrot.lane.b32.xlu0 %v286, 64
    %v391 = vpop.permute.xlu0 %390
    %v393 = vmul.f32 %v384, %v391
    %v394 = vmul.f32 %v384, %v388
    %396 = vrot.lane.b32.xlu0 %v394, 64
    %v397 = vpop.permute.xlu0 %396
    %v399 = vadd.f32 %v393, %v397
    %v400 = vtanh.pop %v399
    %v401 = vmul.f32 %v386, %v400
    %s402 = scalar_lea.vmem [#allocation2], 8
    %v403 = vld [vmem:[%s402] sm:$0xf]
    %405 = vrot.lane.b32.xlu0 %v401, 64
    %v406 = vpop.permute.xlu0 %405
    %v409 = vunpack.c.l.s4 1983009808
    %v410 = vunpack.c.0.s8 %v409
    %v411 = vlaneseq
    %v412 = vshrl.u32 %v411, 7
    %v413 = vsub.s32 %v410, %v412
    %v414 = vrot.slane %v403, %v413
    %v415 = vcombine.high %v414, %v414
    %v418 = vsel %vm300, %v406, 0
    %420 = vmatprep.subr.mxu0 %v251
    %421 = vmatpush1.msra.mxu0 %v250
    %422 = vmatprep.subr.mxu0 %v253
    %423 = vmatpush1.msra.mxu0 %v252
    %424 = vmatprep.subr.mxu0 %v255
    %425 = vmatpush1.msra.mxu0 %v254
    %426 = vmatprep.subr.mxu0 %v257
    %427 = vmatpush1.msra.mxu0 %v256
    %428 = vmatprep.subr.mxu0 %v259
    %429 = vmatpush1.msra.mxu0 %v258
    %430 = vmatprep.subr.mxu0 %v261
    %431 = vmatpush1.msra.mxu0 %v260
    %432 = vmatprep.subr.mxu0 %v263
    %433 = vmatpush1.msra.mxu0 %v262
    %434 = vmatprep.subr.mxu0 %v265
    %435 = vmatpush1.msra.mxu0 %v264
    %436 = vmatprep.subr.mxu0 0.0
    %437 = vmatpush1.msra.mxu0 0.0
    %438 = vmatprep.subr.mxu0 0.0
    %439 = vmatpush1.msra.mxu0 0.0
    %440 = vmatprep.subr.mxu0 0.0
    %441 = vmatpush1.msra.mxu0 0.0
    %442 = vmatprep.subr.mxu0 0.0
    %443 = vmatpush1.msra.mxu0 0.0
    %444 = vmatprep.subr.mxu0 0.0
    %445 = vmatpush1.msra.mxu0 0.0
    %446 = vmatprep.subr.mxu0 0.0
    %447 = vmatpush1.msra.mxu0 0.0
    %448 = vmatprep.subr.mxu0 0.0
    %449 = vmatpush1.msra.mxu0 0.0
    %450 = vmatprep.subr.mxu0 0.0
    %451 = vmatpush1.msra.mxu0 0.0
    %452 = vmatprep.subr.mxu0 0.0
    %453 = vmatpush1.msra.mxu0 0.0
    %454 = vmatprep.subr.mxu0 0.0
    %455 = vmatpush1.msra.mxu0 0.0
    %456 = vmatprep.subr.mxu0 0.0
    %457 = vmatpush1.msra.mxu0 0.0
    %458 = vmatprep.subr.mxu0 0.0
    %459 = vmatpush1.msra.mxu0 0.0
    %460 = vmatprep.subr.mxu0 0.0
    %461 = vmatpush1.msra.mxu0 0.0
    %462 = vmatprep.subr.mxu0 0.0
    %463 = vmatpush1.msra.mxu0 0.0
    %464 = vmatprep.subr.mxu0 0.0
    %465 = vmatpush1.msra.mxu0 0.0
    %466 = vmatprep.subr.mxu0 0.0
    %467 = vmatpush1.msra.mxu0 0.0
    %468 = vmatprep.subr.mxu0 0.0
    %469 = vmatpush1.msra.mxu0 0.0
    %470 = vmatprep.subr.mxu0 0.0
    %471 = vmatpush1.msra.mxu0 0.0
    %472 = vmatprep.subr.mxu0 0.0
    %473 = vmatpush1.msra.mxu0 0.0
    %474 = vmatprep.subr.mxu0 0.0
    %475 = vmatpush1.msra.mxu0 0.0
    %476 = vmatprep.subr.mxu0 0.0
    %477 = vmatpush1.msra.mxu0 0.0
    %478 = vmatprep.subr.mxu0 0.0
    %479 = vmatpush1.msra.mxu0 0.0
    %480 = vmatprep.subr.mxu0 0.0
    %481 = vmatpush1.msra.mxu0 0.0
    %482 = vmatprep.subr.mxu0 0.0
    %483 = vmatpush1.msra.mxu0 0.0
    %484 = vmatprep.mubr.f32.mxu0 0.0
    %485 = vmatmul.mubr.f32.gmra.mrb[0].mxu0 %v418
    %v486 = vpop.f32.mrb[0].mxu0
    %v487 = vadd.f32 %v414, %v486
    %v488 = vpop.f32.mrb[0].mxu0
    %v489 = vadd.f32 %v415, %v488
    %490 = vdwg.mxu0
    %v491 = vxor.u32 %v487, 2147483648
    %v492 = vxor.u32 %v489, 2147483648
    %v493 = vmul.f32 %v491, 1.442695
    %v494 = vpow.pop %v493
    %v495 = vmul.f32 %v492, 1.442695
    %v496 = vpow.pop %v495
    %v497 = vadd.f32 %v494, 1.0
    %v498 = vadd.f32 %v496, 1.0
    %v499 = vrcp.pop %v497
    %v500 = vmul.f32 1.0, %v499
    %v501 = vrcp.pop %v498
    %v502 = vmul.f32 1.0, %v501
    %v503 = vmul.f32 %v502, 2.0
    %v504 = vsub.f32 %v503, 1.0
    %v505 = vmul.f32 %v500, %v399
    %v506 = vmul.f32 %v500, %v504
    %508 = vrot.lane.b32.xlu0 %v506, 64
    %v509 = vpop.permute.xlu0 %508
    %v511 = vadd.f32 %v505, %v509
    %v512 = vtanh.pop %v511
    %v513 = vmul.f32 %v502, %v512
    %s514 = scalar_lea.vmem [#allocation2], 12
    %v515 = vld [vmem:[%s514] sm:$0xf]
    %517 = vrot.lane.b32.xlu0 %v513, 64
    %v518 = vpop.permute.xlu0 %517
    %v521 = vunpack.c.l.s4 1983009808
    %v522 = vunpack.c.0.s8 %v521
    %v523 = vlaneseq
    %v524 = vshrl.u32 %v523, 7
    %v525 = vsub.s32 %v522, %v524
    %v526 = vrot.slane %v515, %v525
    %v527 = vcombine.high %v526, %v526
    %v530 = vsel %vm300, %v518, 0
    %532 = vmatprep.subr.mxu0 %v251
    %533 = vmatpush1.msra.mxu0 %v250
    %534 = vmatprep.subr.mxu0 %v253
    %535 = vmatpush1.msra.mxu0 %v252
    %536 = vmatprep.subr.mxu0 %v255
    %537 = vmatpush1.msra.mxu0 %v254
    %538 = vmatprep.subr.mxu0 %v257
    %539 = vmatpush1.msra.mxu0 %v256
    %540 = vmatprep.subr.mxu0 %v259
    %541 = vmatpush1.msra.mxu0 %v258
    %542 = vmatprep.subr.mxu0 %v261
    %543 = vmatpush1.msra.mxu0 %v260
    %544 = vmatprep.subr.mxu0 %v263
    %545 = vmatpush1.msra.mxu0 %v262
    %546 = vmatprep.subr.mxu0 %v265
    %547 = vmatpush1.msra.mxu0 %v264
    %548 = vmatprep.subr.mxu0 0.0
    %549 = vmatpush1.msra.mxu0 0.0
    %550 = vmatprep.subr.mxu0 0.0
    %551 = vmatpush1.msra.mxu0 0.0
    %552 = vmatprep.subr.mxu0 0.0
    %553 = vmatpush1.msra.mxu0 0.0
    %554 = vmatprep.subr.mxu0 0.0
    %555 = vmatpush1.msra.mxu0 0.0
    %556 = vmatprep.subr.mxu0 0.0
    %557 = vmatpush1.msra.mxu0 0.0
    %558 = vmatprep.subr.mxu0 0.0
    %559 = vmatpush1.msra.mxu0 0.0
    %560 = vmatprep.subr.mxu0 0.0
    %561 = vmatpush1.msra.mxu0 0.0
    %562 = vmatprep.subr.mxu0 0.0
    %563 = vmatpush1.msra.mxu0 0.0
    %564 = vmatprep.subr.mxu0 0.0
    %565 = vmatpush1.msra.mxu0 0.0
    %566 = vmatprep.subr.mxu0 0.0
    %567 = vmatpush1.msra.mxu0 0.0
    %568 = vmatprep.subr.mxu0 0.0
    %569 = vmatpush1.msra.mxu0 0.0
    %570 = vmatprep.subr.mxu0 0.0
    %571 = vmatpush1.msra.mxu0 0.0
    %572 = vmatprep.subr.mxu0 0.0
    %573 = vmatpush1.msra.mxu0 0.0
    %574 = vmatprep.subr.mxu0 0.0
    %575 = vmatpush1.msra.mxu0 0.0
    %576 = vmatprep.subr.mxu0 0.0
    %577 = vmatpush1.msra.mxu0 0.0
    %578 = vmatprep.subr.mxu0 0.0
    %579 = vmatpush1.msra.mxu0 0.0
    %580 = vmatprep.subr.mxu0 0.0
    %581 = vmatpush1.msra.mxu0 0.0
    %582 = vmatprep.subr.mxu0 0.0
    %583 = vmatpush1.msra.mxu0 0.0
    %584 = vmatprep.subr.mxu0 0.0
    %585 = vmatpush1.msra.mxu0 0.0
    %586 = vmatprep.subr.mxu0 0.0
    %587 = vmatpush1.msra.mxu0 0.0
    %588 = vmatprep.subr.mxu0 0.0
    %589 = vmatpush1.msra.mxu0 0.0
    %590 = vmatprep.subr.mxu0 0.0
    %591 = vmatpush1.msra.mxu0 0.0
    %592 = vmatprep.subr.mxu0 0.0
    %593 = vmatpush1.msra.mxu0 0.0
    %594 = vmatprep.subr.mxu0 0.0
    %595 = vmatpush1.msra.mxu0 0.0
    %596 = vmatprep.mubr.f32.mxu0 0.0
    %597 = vmatmul.mubr.f32.gmra.mrb[0].mxu0 %v530
    %v598 = vpop.f32.mrb[0].mxu0
    %v599 = vadd.f32 %v526, %v598
    %v600 = vpop.f32.mrb[0].mxu0
    %v601 = vadd.f32 %v527, %v600
    %602 = vdwg.mxu0
    %v603 = vxor.u32 %v599, 2147483648
    %v604 = vxor.u32 %v601, 2147483648
    %v605 = vmul.f32 %v603, 1.442695
    %v606 = vpow.pop %v605
    %v607 = vmul.f32 %v604, 1.442695
    %v608 = vpow.pop %v607
    %v609 = vadd.f32 %v606, 1.0
    %v610 = vadd.f32 %v608, 1.0
    %v611 = vrcp.pop %v609
    %v612 = vmul.f32 1.0, %v611
    %v613 = vrcp.pop %v610
    %v614 = vmul.f32 1.0, %v613
    %v615 = vmul.f32 %v614, 2.0
    %v616 = vsub.f32 %v615, 1.0
    %v617 = vmul.f32 %v612, %v511
    %v618 = vmul.f32 %v612, %v616
    %620 = vrot.lane.b32.xlu0 %v618, 64
    %v621 = vpop.permute.xlu0 %620
    %v623 = vadd.f32 %v617, %v621
    %v624 = vtanh.pop %v623
    %v625 = vmul.f32 %v614, %v624
    %s626 = scalar_lea.vmem [#allocation2], 16
    %v627 = vld [vmem:[%s626] sm:$0xf]
    %629 = vrot.lane.b32.xlu0 %v625, 64
    %v630 = vpop.permute.xlu0 %629
    %v633 = vunpack.c.l.s4 1983009808
    %v634 = vunpack.c.0.s8 %v633
    %v635 = vlaneseq
    %v636 = vshrl.u32 %v635, 7
    %v637 = vsub.s32 %v634, %v636
    %v638 = vrot.slane %v627, %v637
    %v639 = vcombine.high %v638, %v638
    %v642 = vsel %vm300, %v630, 0
    %644 = vmatprep.subr.mxu0 %v251
    %645 = vmatpush1.msra.mxu0 %v250
    %646 = vmatprep.subr.mxu0 %v253
    %647 = vmatpush1.msra.mxu0 %v252
    %648 = vmatprep.subr.mxu0 %v255
    %649 = vmatpush1.msra.mxu0 %v254
    %650 = vmatprep.subr.mxu0 %v257
    %651 = vmatpush1.msra.mxu0 %v256
    %652 = vmatprep.subr.mxu0 %v259
    %653 = vmatpush1.msra.mxu0 %v258
    %654 = vmatprep.subr.mxu0 %v261
    %655 = vmatpush1.msra.mxu0 %v260
    %656 = vmatprep.subr.mxu0 %v263
    %657 = vmatpush1.msra.mxu0 %v262
    %658 = vmatprep.subr.mxu0 %v265
    %659 = vmatpush1.msra.mxu0 %v264
    %660 = vmatprep.subr.mxu0 0.0
    %661 = vmatpush1.msra.mxu0 0.0
    %662 = vmatprep.subr.mxu0 0.0
    %663 = vmatpush1.msra.mxu0 0.0
    %664 = vmatprep.subr.mxu0 0.0
    %665 = vmatpush1.msra.mxu0 0.0
    %666 = vmatprep.subr.mxu0 0.0
    %667 = vmatpush1.msra.mxu0 0.0
    %668 = vmatprep.subr.mxu0 0.0
    %669 = vmatpush1.msra.mxu0 0.0
    %670 = vmatprep.subr.mxu0 0.0
    %671 = vmatpush1.msra.mxu0 0.0
    %672 = vmatprep.subr.mxu0 0.0
    %673 = vmatpush1.msra.mxu0 0.0
    %674 = vmatprep.subr.mxu0 0.0
    %675 = vmatpush1.msra.mxu0 0.0
    %676 = vmatprep.subr.mxu0 0.0
    %677 = vmatpush1.msra.mxu0 0.0
    %678 = vmatprep.subr.mxu0 0.0
    %679 = vmatpush1.msra.mxu0 0.0
    %680 = vmatprep.subr.mxu0 0.0
    %681 = vmatpush1.msra.mxu0 0.0
    %682 = vmatprep.subr.mxu0 0.0
    %683 = vmatpush1.msra.mxu0 0.0
    %684 = vmatprep.subr.mxu0 0.0
    %685 = vmatpush1.msra.mxu0 0.0
    %686 = vmatprep.subr.mxu0 0.0
    %687 = vmatpush1.msra.mxu0 0.0
    %688 = vmatprep.subr.mxu0 0.0
    %689 = vmatpush1.msra.mxu0 0.0
    %690 = vmatprep.subr.mxu0 0.0
    %691 = vmatpush1.msra.mxu0 0.0
    %692 = vmatprep.subr.mxu0 0.0
    %693 = vmatpush1.msra.mxu0 0.0
    %694 = vmatprep.subr.mxu0 0.0
    %695 = vmatpush1.msra.mxu0 0.0
    %696 = vmatprep.subr.mxu0 0.0
    %697 = vmatpush1.msra.mxu0 0.0
    %698 = vmatprep.subr.mxu0 0.0
    %699 = vmatpush1.msra.mxu0 0.0
    %700 = vmatprep.subr.mxu0 0.0
    %701 = vmatpush1.msra.mxu0 0.0
    %702 = vmatprep.subr.mxu0 0.0
    %703 = vmatpush1.msra.mxu0 0.0
    %704 = vmatprep.subr.mxu0 0.0
    %705 = vmatpush1.msra.mxu0 0.0
    %706 = vmatprep.subr.mxu0 0.0
    %707 = vmatpush1.msra.mxu0 0.0
    %708 = vmatprep.mubr.f32.mxu0 0.0
    %709 = vmatmul.mubr.f32.gmra.mrb[0].mxu0 %v642
    %v710 = vpop.f32.mrb[0].mxu0
    %v711 = vadd.f32 %v638, %v710
    %v712 = vpop.f32.mrb[0].mxu0
    %v713 = vadd.f32 %v639, %v712
    %714 = vdwg.mxu0
    %v715 = vxor.u32 %v711, 2147483648
    %v716 = vxor.u32 %v713, 2147483648
    %v717 = vmul.f32 %v715, 1.442695
    %v718 = vpow.pop %v717
    %v719 = vmul.f32 %v716, 1.442695
    %v720 = vpow.pop %v719
    %v721 = vadd.f32 %v718, 1.0
    %v722 = vadd.f32 %v720, 1.0
    %v723 = vrcp.pop %v721
    %v724 = vmul.f32 1.0, %v723
    %v725 = vrcp.pop %v722
    %v726 = vmul.f32 1.0, %v725
    %v727 = vmul.f32 %v726, 2.0
    %v728 = vsub.f32 %v727, 1.0
    %v729 = vmul.f32 %v724, %v623
    %v730 = vmul.f32 %v724, %v728
    %732 = vrot.lane.b32.xlu0 %v730, 64
    %v733 = vpop.permute.xlu0 %732
    %v735 = vadd.f32 %v729, %v733
    %v736 = vtanh.pop %v735
    %v737 = vmul.f32 %v726, %v736
    %s738 = scalar_lea.vmem [#allocation2], 20
    %v739 = vld [vmem:[%s738] sm:$0xf]
    %741 = vrot.lane.b32.xlu0 %v737, 64
    %v742 = vpop.permute.xlu0 %741
    %v745 = vunpack.c.l.s4 1983009808
    %v746 = vunpack.c.0.s8 %v745
    %v747 = vlaneseq
    %v748 = vshrl.u32 %v747, 7
    %v749 = vsub.s32 %v746, %v748
    %v750 = vrot.slane %v739, %v749
    %v751 = vcombine.high %v750, %v750
    %v754 = vsel %vm300, %v742, 0
    %756 = vmatprep.subr.mxu0 %v251
    %757 = vmatpush1.msra.mxu0 %v250
    %758 = vmatprep.subr.mxu0 %v253
    %759 = vmatpush1.msra.mxu0 %v252
    %760 = vmatprep.subr.mxu0 %v255
    %761 = vmatpush1.msra.mxu0 %v254
    %762 = vmatprep.subr.mxu0 %v257
    %763 = vmatpush1.msra.mxu0 %v256
    %764 = vmatprep.subr.mxu0 %v259
    %765 = vmatpush1.msra.mxu0 %v258
    %766 = vmatprep.subr.mxu0 %v261
    %767 = vmatpush1.msra.mxu0 %v260
    %768 = vmatprep.subr.mxu0 %v263
    %769 = vmatpush1.msra.mxu0 %v262
    %770 = vmatprep.subr.mxu0 %v265
    %771 = vmatpush1.msra.mxu0 %v264
    %772 = vmatprep.subr.mxu0 0.0
    %773 = vmatpush1.msra.mxu0 0.0
    %774 = vmatprep.subr.mxu0 0.0
    %775 = vmatpush1.msra.mxu0 0.0
    %776 = vmatprep.subr.mxu0 0.0
    %777 = vmatpush1.msra.mxu0 0.0
    %778 = vmatprep.subr.mxu0 0.0
    %779 = vmatpush1.msra.mxu0 0.0
    %780 = vmatprep.subr.mxu0 0.0
    %781 = vmatpush1.msra.mxu0 0.0
    %782 = vmatprep.subr.mxu0 0.0
    %783 = vmatpush1.msra.mxu0 0.0
    %784 = vmatprep.subr.mxu0 0.0
    %785 = vmatpush1.msra.mxu0 0.0
    %786 = vmatprep.subr.mxu0 0.0
    %787 = vmatpush1.msra.mxu0 0.0
    %788 = vmatprep.subr.mxu0 0.0
    %789 = vmatpush1.msra.mxu0 0.0
    %790 = vmatprep.subr.mxu0 0.0
    %791 = vmatpush1.msra.mxu0 0.0
    %792 = vmatprep.subr.mxu0 0.0
    %793 = vmatpush1.msra.mxu0 0.0
    %794 = vmatprep.subr.mxu0 0.0
    %795 = vmatpush1.msra.mxu0 0.0
    %796 = vmatprep.subr.mxu0 0.0
    %797 = vmatpush1.msra.mxu0 0.0
    %798 = vmatprep.subr.mxu0 0.0
    %799 = vmatpush1.msra.mxu0 0.0
    %800 = vmatprep.subr.mxu0 0.0
    %801 = vmatpush1.msra.mxu0 0.0
    %802 = vmatprep.subr.mxu0 0.0
    %803 = vmatpush1.msra.mxu0 0.0
    %804 = vmatprep.subr.mxu0 0.0
    %805 = vmatpush1.msra.mxu0 0.0
    %806 = vmatprep.subr.mxu0 0.0
    %807 = vmatpush1.msra.mxu0 0.0
    %808 = vmatprep.subr.mxu0 0.0
    %809 = vmatpush1.msra.mxu0 0.0
    %810 = vmatprep.subr.mxu0 0.0
    %811 = vmatpush1.msra.mxu0 0.0
    %812 = vmatprep.subr.mxu0 0.0
    %813 = vmatpush1.msra.mxu0 0.0
    %814 = vmatprep.subr.mxu0 0.0
    %815 = vmatpush1.msra.mxu0 0.0
    %816 = vmatprep.subr.mxu0 0.0
    %817 = vmatpush1.msra.mxu0 0.0
    %818 = vmatprep.subr.mxu0 0.0
    %819 = vmatpush1.msra.mxu0 0.0
    %820 = vmatprep.mubr.f32.mxu0 0.0
    %821 = vmatmul.mubr.f32.gmra.mrb[0].mxu0 %v754
    %v822 = vpop.f32.mrb[0].mxu0
    %v823 = vadd.f32 %v750, %v822
    %v824 = vpop.f32.mrb[0].mxu0
    %v825 = vadd.f32 %v751, %v824
    %826 = vdwg.mxu0
    %v827 = vxor.u32 %v823, 2147483648
    %v828 = vxor.u32 %v825, 2147483648
    %v829 = vmul.f32 %v827, 1.442695
    %v830 = vpow.pop %v829
    %v831 = vmul.f32 %v828, 1.442695
    %v832 = vpow.pop %v831
    %v833 = vadd.f32 %v830, 1.0
    %v834 = vadd.f32 %v832, 1.0
    %v835 = vrcp.pop %v833
    %v836 = vmul.f32 1.0, %v835
    %v837 = vrcp.pop %v834
    %v838 = vmul.f32 1.0, %v837
    %v839 = vmul.f32 %v838, 2.0
    %v840 = vsub.f32 %v839, 1.0
    %v841 = vmul.f32 %v836, %v735
    %v842 = vmul.f32 %v836, %v840
    %844 = vrot.lane.b32.xlu0 %v842, 64
    %v845 = vpop.permute.xlu0 %844
    %v847 = vadd.f32 %v841, %v845
    %v848 = vtanh.pop %v847
    %v849 = vmul.f32 %v838, %v848
    %s850 = scalar_lea.vmem [#allocation2], 24
    %v851 = vld [vmem:[%s850] sm:$0xf]
    %853 = vrot.lane.b32.xlu0 %v849, 64
    %v854 = vpop.permute.xlu0 %853
    %v857 = vunpack.c.l.s4 1983009808
    %v858 = vunpack.c.0.s8 %v857
    %v859 = vlaneseq
    %v860 = vshrl.u32 %v859, 7
    %v861 = vsub.s32 %v858, %v860
    %v862 = vrot.slane %v851, %v861
    %v863 = vcombine.high %v862, %v862
    %v866 = vsel %vm300, %v854, 0
    %868 = vmatprep.subr.mxu0 %v251
    %869 = vmatpush1.msra.mxu0 %v250
    %870 = vmatprep.subr.mxu0 %v253
    %871 = vmatpush1.msra.mxu0 %v252
    %872 = vmatprep.subr.mxu0 %v255
    %873 = vmatpush1.msra.mxu0 %v254
    %874 = vmatprep.subr.mxu0 %v257
    %875 = vmatpush1.msra.mxu0 %v256
    %876 = vmatprep.subr.mxu0 %v259
    %877 = vmatpush1.msra.mxu0 %v258
    %878 = vmatprep.subr.mxu0 %v261
    %879 = vmatpush1.msra.mxu0 %v260
    %880 = vmatprep.subr.mxu0 %v263
    %881 = vmatpush1.msra.mxu0 %v262
    %882 = vmatprep.subr.mxu0 %v265
    %883 = vmatpush1.msra.mxu0 %v264
    %884 = vmatprep.subr.mxu0 0.0
    %885 = vmatpush1.msra.mxu0 0.0
    %886 = vmatprep.subr.mxu0 0.0
    %887 = vmatpush1.msra.mxu0 0.0
    %888 = vmatprep.subr.mxu0 0.0
    %889 = vmatpush1.msra.mxu0 0.0
    %890 = vmatprep.subr.mxu0 0.0
    %891 = vmatpush1.msra.mxu0 0.0
    %892 = vmatprep.subr.mxu0 0.0
    %893 = vmatpush1.msra.mxu0 0.0
    %894 = vmatprep.subr.mxu0 0.0
    %895 = vmatpush1.msra.mxu0 0.0
    %896 = vmatprep.subr.mxu0 0.0
    %897 = vmatpush1.msra.mxu0 0.0
    %898 = vmatprep.subr.mxu0 0.0
    %899 = vmatpush1.msra.mxu0 0.0
    %900 = vmatprep.subr.mxu0 0.0
    %901 = vmatpush1.msra.mxu0 0.0
    %902 = vmatprep.subr.mxu0 0.0
    %903 = vmatpush1.msra.mxu0 0.0
    %904 = vmatprep.subr.mxu0 0.0
    %905 = vmatpush1.msra.mxu0 0.0
    %906 = vmatprep.subr.mxu0 0.0
    %907 = vmatpush1.msra.mxu0 0.0
    %908 = vmatprep.subr.mxu0 0.0
    %909 = vmatpush1.msra.mxu0 0.0
    %910 = vmatprep.subr.mxu0 0.0
    %911 = vmatpush1.msra.mxu0 0.0
    %912 = vmatprep.subr.mxu0 0.0
    %913 = vmatpush1.msra.mxu0 0.0
    %914 = vmatprep.subr.mxu0 0.0
    %915 = vmatpush1.msra.mxu0 0.0
    %916 = vmatprep.subr.mxu0 0.0
    %917 = vmatpush1.msra.mxu0 0.0
    %918 = vmatprep.subr.mxu0 0.0
    %919 = vmatpush1.msra.mxu0 0.0
    %920 = vmatprep.subr.mxu0 0.0
    %921 = vmatpush1.msra.mxu0 0.0
    %922 = vmatprep.subr.mxu0 0.0
    %923 = vmatpush1.msra.mxu0 0.0
    %924 = vmatprep.subr.mxu0 0.0
    %925 = vmatpush1.msra.mxu0 0.0
    %926 = vmatprep.subr.mxu0 0.0
    %927 = vmatpush1.msra.mxu0 0.0
    %928 = vmatprep.subr.mxu0 0.0
    %929 = vmatpush1.msra.mxu0 0.0
    %930 = vmatprep.subr.mxu0 0.0
    %931 = vmatpush1.msra.mxu0 0.0
    %932 = vmatprep.mubr.f32.mxu0 0.0
    %933 = vmatmul.mubr.f32.gmra.mrb[0].mxu0 %v866
    %v934 = vpop.f32.mrb[0].mxu0
    %v935 = vadd.f32 %v862, %v934
    %v936 = vpop.f32.mrb[0].mxu0
    %v937 = vadd.f32 %v863, %v936
    %938 = vdwg.mxu0
    %v939 = vxor.u32 %v935, 2147483648
    %v940 = vxor.u32 %v937, 2147483648
    %v941 = vmul.f32 %v939, 1.442695
    %v942 = vpow.pop %v941
    %v943 = vmul.f32 %v940, 1.442695
    %v944 = vpow.pop %v943
    %v945 = vadd.f32 %v942, 1.0
    %v946 = vadd.f32 %v944, 1.0
    %v947 = vrcp.pop %v945
    %v948 = vmul.f32 1.0, %v947
    %v949 = vrcp.pop %v946
    %v950 = vmul.f32 1.0, %v949
    %v951 = vmul.f32 %v950, 2.0
    %v952 = vsub.f32 %v951, 1.0
    %v953 = vmul.f32 %v948, %v847
    %v954 = vmul.f32 %v948, %v952
    %956 = vrot.lane.b32.xlu0 %v954, 64
    %v957 = vpop.permute.xlu0 %956
    %v959 = vadd.f32 %v953, %v957
    %v960 = vtanh.pop %v959
    %v961 = vmul.f32 %v950, %v960
    %s962 = scalar_lea.vmem [#allocation2], 28
    %v963 = vld [vmem:[%s962] sm:$0xf]
    %965 = vrot.lane.b32.xlu0 %v961, 64
    %v966 = vpop.permute.xlu0 %965
    %v969 = vunpack.c.l.s4 1983009808
    %v970 = vunpack.c.0.s8 %v969
    %v971 = vlaneseq
    %v972 = vshrl.u32 %v971, 7
    %v973 = vsub.s32 %v970, %v972
    %v974 = vrot.slane %v963, %v973
    %v975 = vcombine.high %v974, %v974
    %v978 = vsel %vm300, %v966, 0
    %980 = vmatprep.subr.mxu0 %v251
    %981 = vmatpush1.msra.mxu0 %v250
    %982 = vmatprep.subr.mxu0 %v253
    %983 = vmatpush1.msra.mxu0 %v252
    %984 = vmatprep.subr.mxu0 %v255
    %985 = vmatpush1.msra.mxu0 %v254
    %986 = vmatprep.subr.mxu0 %v257
    %987 = vmatpush1.msra.mxu0 %v256
    %988 = vmatprep.subr.mxu0 %v259
    %989 = vmatpush1.msra.mxu0 %v258
    %990 = vmatprep.subr.mxu0 %v261
    %991 = vmatpush1.msra.mxu0 %v260
    %992 = vmatprep.subr.mxu0 %v263
    %993 = vmatpush1.msra.mxu0 %v262
    %994 = vmatprep.subr.mxu0 %v265
    %995 = vmatpush1.msra.mxu0 %v264
    %996 = vmatprep.subr.mxu0 0.0
    %997 = vmatpush1.msra.mxu0 0.0
    %998 = vmatprep.subr.mxu0 0.0
    %999 = vmatpush1.msra.mxu0 0.0
    %1000 = vmatprep.subr.mxu0 0.0
    %1001 = vmatpush1.msra.mxu0 0.0
    %1002 = vmatprep.subr.mxu0 0.0
    %1003 = vmatpush1.msra.mxu0 0.0
    %1004 = vmatprep.subr.mxu0 0.0
    %1005 = vmatpush1.msra.mxu0 0.0
    %1006 = vmatprep.subr.mxu0 0.0
    %1007 = vmatpush1.msra.mxu0 0.0
    %1008 = vmatprep.subr.mxu0 0.0
    %1009 = vmatpush1.msra.mxu0 0.0
    %1010 = vmatprep.subr.mxu0 0.0
    %1011 = vmatpush1.msra.mxu0 0.0
    %1012 = vmatprep.subr.mxu0 0.0
    %1013 = vmatpush1.msra.mxu0 0.0
    %1014 = vmatprep.subr.mxu0 0.0
    %1015 = vmatpush1.msra.mxu0 0.0
    %1016 = vmatprep.subr.mxu0 0.0
    %1017 = vmatpush1.msra.mxu0 0.0
    %1018 = vmatprep.subr.mxu0 0.0
    %1019 = vmatpush1.msra.mxu0 0.0
    %1020 = vmatprep.subr.mxu0 0.0
    %1021 = vmatpush1.msra.mxu0 0.0
    %1022 = vmatprep.subr.mxu0 0.0
    %1023 = vmatpush1.msra.mxu0 0.0
    %1024 = vmatprep.subr.mxu0 0.0
    %1025 = vmatpush1.msra.mxu0 0.0
    %1026 = vmatprep.subr.mxu0 0.0
    %1027 = vmatpush1.msra.mxu0 0.0
    %1028 = vmatprep.subr.mxu0 0.0
    %1029 = vmatpush1.msra.mxu0 0.0
    %1030 = vmatprep.subr.mxu0 0.0
    %1031 = vmatpush1.msra.mxu0 0.0
    %1032 = vmatprep.subr.mxu0 0.0
    %1033 = vmatpush1.msra.mxu0 0.0
    %1034 = vmatprep.subr.mxu0 0.0
    %1035 = vmatpush1.msra.mxu0 0.0
    %1036 = vmatprep.subr.mxu0 0.0
    %1037 = vmatpush1.msra.mxu0 0.0
    %1038 = vmatprep.subr.mxu0 0.0
    %1039 = vmatpush1.msra.mxu0 0.0
    %1040 = vmatprep.subr.mxu0 0.0
    %1041 = vmatpush1.msra.mxu0 0.0
    %1042 = vmatprep.subr.mxu0 0.0
    %1043 = vmatpush1.msra.mxu0 0.0
    %1044 = vmatprep.mubr.f32.mxu0 0.0
    %1045 = vmatmul.mubr.f32.gmra.mrb[0].mxu0 %v978
    %v1046 = vpop.f32.mrb[0].mxu0
    %v1047 = vadd.f32 %v974, %v1046
    %v1048 = vpop.f32.mrb[0].mxu0
    %v1049 = vadd.f32 %v975, %v1048
    %1050 = vdwg.mxu0
    %v1051 = vxor.u32 %v1047, 2147483648
    %v1052 = vxor.u32 %v1049, 2147483648
    %v1053 = vmul.f32 %v1051, 1.442695
    %v1054 = vpow.pop %v1053
    %v1055 = vmul.f32 %v1052, 1.442695
    %v1056 = vpow.pop %v1055
    %v1057 = vadd.f32 %v1054, 1.0
    %v1058 = vadd.f32 %v1056, 1.0
    %v1059 = vrcp.pop %v1057
    %v1060 = vmul.f32 1.0, %v1059
    %v1061 = vrcp.pop %v1058
    %v1062 = vmul.f32 1.0, %v1061
    %v1063 = vmul.f32 %v1062, 2.0
    %v1064 = vsub.f32 %v1063, 1.0
    %v1065 = vmul.f32 %v1060, %v959
    %v1066 = vmul.f32 %v1060, %v1064
    %1068 = vrot.lane.b32.xlu0 %v1066, 64
    %v1069 = vpop.permute.xlu0 %1068
    %v1071 = vadd.f32 %v1065, %v1069
    %v1072 = vtanh.pop %v1071
    %v1073 = vmul.f32 %v1062, %v1072
    %1075 = vrot.lane.b32.xlu0 %v1073, 64
    %v1076 = vpop.permute.xlu0 %1075
    %v1077 = vsel %vm300, %v1076, 0
    %1079 = vmatprep.subr.mxu0 %v251
    %1080 = vmatpush1.msra.mxu0 %v250
    %1081 = vmatprep.subr.mxu0 %v253
    %1082 = vmatpush1.msra.mxu0 %v252
    %1083 = vmatprep.subr.mxu0 %v255
    %1084 = vmatpush1.msra.mxu0 %v254
    %1085 = vmatprep.subr.mxu0 %v257
    %1086 = vmatpush1.msra.mxu0 %v256
    %1087 = vmatprep.subr.mxu0 %v259
    %1088 = vmatpush1.msra.mxu0 %v258
    %1089 = vmatprep.subr.mxu0 %v261
    %1090 = vmatpush1.msra.mxu0 %v260
    %1091 = vmatprep.subr.mxu0 %v263
    %1092 = vmatpush1.msra.mxu0 %v262
    %1093 = vmatprep.subr.mxu0 %v265
    %1094 = vmatpush1.msra.mxu0 %v264
    %1095 = vmatprep.subr.mxu0 0.0
    %1096 = vmatpush1.msra.mxu0 0.0
    %1097 = vmatprep.subr.mxu0 0.0
    %1098 = vmatpush1.msra.mxu0 0.0
    %1099 = vmatprep.subr.mxu0 0.0
    %1100 = vmatpush1.msra.mxu0 0.0
    %1101 = vmatprep.subr.mxu0 0.0
    %1102 = vmatpush1.msra.mxu0 0.0
    %1103 = vmatprep.subr.mxu0 0.0
    %1104 = vmatpush1.msra.mxu0 0.0
    %1105 = vmatprep.subr.mxu0 0.0
    %1106 = vmatpush1.msra.mxu0 0.0
    %1107 = vmatprep.subr.mxu0 0.0
    %1108 = vmatpush1.msra.mxu0 0.0
    %1109 = vmatprep.subr.mxu0 0.0
    %1110 = vmatpush1.msra.mxu0 0.0
    %1111 = vmatprep.subr.mxu0 0.0
    %1112 = vmatpush1.msra.mxu0 0.0
    %1113 = vmatprep.subr.mxu0 0.0
    %1114 = vmatpush1.msra.mxu0 0.0
    %1115 = vmatprep.subr.mxu0 0.0
    %1116 = vmatpush1.msra.mxu0 0.0
    %1117 = vmatprep.subr.mxu0 0.0
    %1118 = vmatpush1.msra.mxu0 0.0
    %1119 = vmatprep.subr.mxu0 0.0
    %1120 = vmatpush1.msra.mxu0 0.0
    %1121 = vmatprep.subr.mxu0 0.0
    %1122 = vmatpush1.msra.mxu0 0.0
    %1123 = vmatprep.subr.mxu0 0.0
    %1124 = vmatpush1.msra.mxu0 0.0
    %1125 = vmatprep.subr.mxu0 0.0
    %1126 = vmatpush1.msra.mxu0 0.0
    %1127 = vmatprep.subr.mxu0 0.0
    %1128 = vmatpush1.msra.mxu0 0.0
    %1129 = vmatprep.subr.mxu0 0.0
    %1130 = vmatpush1.msra.mxu0 0.0
    %1131 = vmatprep.subr.mxu0 0.0
    %1132 = vmatpush1.msra.mxu0 0.0
    %1133 = vmatprep.subr.mxu0 0.0
    %1134 = vmatpush1.msra.mxu0 0.0
    %1135 = vmatprep.subr.mxu0 0.0
    %1136 = vmatpush1.msra.mxu0 0.0
    %1137 = vmatprep.subr.mxu0 0.0
    %1138 = vmatpush1.msra.mxu0 0.0
    %1139 = vmatprep.subr.mxu0 0.0
    %1140 = vmatpush1.msra.mxu0 0.0
    %1141 = vmatprep.subr.mxu0 0.0
    %1142 = vmatpush1.msra.mxu0 0.0
    %1143 = vmatprep.mubr.f32.mxu0 0.0
    %1144 = vmatmul.mubr.f32.gmra.mrb[0].mxu0 %v1077
    %v1145 = vpop.f32.mrb[0].mxu0
    %v1146 = vadd.f32 %v974, %v1145
    %v1147 = vpop.f32.mrb[0].mxu0
    %v1148 = vadd.f32 %v975, %v1147
    %1149 = vdwg.mxu0
    %v1150 = vxor.u32 %v1146, 2147483648
    %v1151 = vxor.u32 %v1148, 2147483648
    %v1152 = vmul.f32 %v1150, 1.442695
    %v1153 = vpow.pop %v1152
    %v1154 = vmul.f32 %v1151, 1.442695
    %v1155 = vpow.pop %v1154
    %v1156 = vadd.f32 %v1153, 1.0
    %v1157 = vadd.f32 %v1155, 1.0
    %v1158 = vrcp.pop %v1156
    %v1159 = vmul.f32 1.0, %v1158
    %v1160 = vrcp.pop %v1157
    %v1161 = vmul.f32 1.0, %v1160
    %v1162 = vmul.f32 %v1161, 2.0
    %v1163 = vsub.f32 %v1162, 1.0
    %v1164 = vmul.f32 %v1159, %v1071
    %v1165 = vmul.f32 %v1159, %v1163
    %1167 = vrot.lane.b32.xlu0 %v1165, 64
    %v1168 = vpop.permute.xlu0 %1167
    %v1170 = vadd.f32 %v1164, %v1168
    %v1171 = vtanh.pop %v1170
    %v1172 = vmul.f32 %v1161, %v1171
    %1175 = vrot.lane.b32.xlu0 %v1172, 64
    %v1176 = vpop.permute.xlu0 %1175
    %v1178 = vsel %vm110, %v1076, %v1176
    %v1179 = vld [vmem:[%s6] sm:$0x1]
    %v1181 = vlaneseq
    %v1182 = vshrl.u32 %v1181, 7
    %v1183 = vsub.s32 0, %v1182
    %v1184 = vrot.slane %v1179, %v1183
    %v1186 = vmul.f32 %v1178, %v1184
    %vm1187 = vcmask 517120
    %v1188 = vsel %vm1187, %v1186, 0.0
    %1189 = vadd.xlane.f32.xlu0 %v1188
    %v1190 = vpop.xlane.xlu0 %1189
    %s1191 = sld [smem:[#allocation3]]
    %v1192 = vstv %s1191
    %v1193 = vadd.f32 %v1190, %v1192
    %vm1194 = vcmask 1024
    %1195 = vst.msk [vmem:[%s8] sm:$0x3] %vm1194, %v1193
    // Predicated region
    $region42: #{tpu_custom_call.1} parent=1 // pred_check
      _
    $region43: #{tpu_custom_call.1} parent=1 // pred_check_branch
      %1197 = sbr.rel (0) target = $region45
    $region44: #{tpu_custom_call.1} parent=1 // pred_region
      _
    $region45: #{tpu_custom_call.1} parent=1 // pred_fallthru
      _
    // Predicated region
    $region46: #{tpu_custom_call.1} parent=1 // pred_check
      _
    $region47: #{tpu_custom_call.1} parent=1 // pred_check_branch
      %1199 = sbr.rel (0) target = $region49
    $region48: #{tpu_custom_call.1} parent=1 // pred_region
      _
    $region49: #{tpu_custom_call.1} parent=1 // pred_fallthru
      _
    %1200 = vsyncpa [#allocation5], 1
    %1201 = vsyncpa [#allocation7], 1

</llo_original>
